<compile_context>
chip_gen: v7x
topology: tpu7x:2x2x1
jax: 0.10.0
libtpu: 0.0.40
codegen_flags: <defaults>
</compile_context>

<pallas_src>
import jax
import jax.numpy as jnp
from jax.experimental import pallas as pl
from jax.experimental.pallas import tpu as pltpu

NUM_CLASSES = 100
C, H, W = 3, 32, 32
D = C * H * W

CIFAR100_MEAN = (0.5071, 0.4867, 0.4408)
CIFAR100_STD = (0.2675, 0.2565, 0.2761)


def _ensemble_member_kernel(x_ref, mean_ref, istd_ref, w_ref, b_ref, o_ref):
    """Normalize (f32, VPU) -> bf16 matmul on MXU (f32 accumulation) -> +bias."""
    xn = (x_ref[...] - mean_ref[...]) * istd_ref[...]            # (B, D) f32
    logits = jnp.dot(xn.astype(jnp.bfloat16), w_ref[...],        # (B, K) f32
                     preferred_element_type=jnp.float32)
    o_ref[...] = logits + b_ref[...]


def ensemble_forward(x_nchw, weights, biases, reduction="mean"):
    """x_nchw: [B,3,32,32] f32 in [0,1]; weights: [M,D,100]; biases: [M,100]."""
    B = x_nchw.shape[0]
    M = weights.shape[0]

    # Glue: flatten NCHW channel-major; length-D normalization vectors in the
    # same (C,H,W) flatten order.
    x2d = x_nchw.reshape(B, D).astype(jnp.float32)
    mean_vec = jnp.repeat(
        jnp.asarray(CIFAR100_MEAN, jnp.float32), H * W).reshape(1, D)
    istd_vec = jnp.repeat(
        1.0 / jnp.asarray(CIFAR100_STD, jnp.float32), H * W).reshape(1, D)

    if reduction in ("mean", "sum"):
        # Algebraic pre-reduction of the member heads (valid only for mean/sum):
        # sum_m(xn @ W_m + b_m) == xn @ sum_m(W_m) + sum_m(b_m).
        wf = weights.astype(jnp.float32)
        bf = biases.astype(jnp.float32)
        if reduction == "mean":
            w_eff = wf.mean(axis=0)
            b_eff = bf.mean(axis=0)
        else:
            w_eff = wf.sum(axis=0)
            b_eff = bf.sum(axis=0)
        w_bf16 = w_eff.astype(jnp.bfloat16)                       # (D, K)
        b_row = b_eff.reshape(1, NUM_CLASSES)                     # (1, K) f32

        return pl.pallas_call(
            _ensemble_member_kernel,
            out_shape=jax.ShapeDtypeStruct((B, NUM_CLASSES), jnp.float32),
            grid_spec=pltpu.PrefetchScalarGridSpec(
                num_scalar_prefetch=0,
                grid=(1,),
                in_specs=[
                    pl.BlockSpec((B, D), lambda m: (0, 0)),               # x2d
                    pl.BlockSpec((1, D), lambda m: (0, 0)),               # mean
                    pl.BlockSpec((1, D), lambda m: (0, 0)),               # 1/std
                    pl.BlockSpec((D, NUM_CLASSES), lambda m: (0, 0)),     # W_eff
                    pl.BlockSpec((1, NUM_CLASSES), lambda m: (0, 0)),     # b_eff
                ],
                out_specs=pl.BlockSpec((B, NUM_CLASSES), lambda m: (0, 0)),
            ),
            compiler_params=pltpu.CompilerParams(
                dimension_semantics=("arbitrary",)),
        )(x2d, mean_vec, istd_vec, w_bf16, b_row)

    if reduction == "none":
        # Per-member grid; each member writes its own [B, 100] output block.
        w_bf16 = weights.astype(jnp.bfloat16)                     # (M, D, K)
        b3 = biases.astype(jnp.float32).reshape(M, 1, NUM_CLASSES)

        return pl.pallas_call(
            _ensemble_member_kernel,
            out_shape=jax.ShapeDtypeStruct((M, B, NUM_CLASSES), jnp.float32),
            grid_spec=pltpu.PrefetchScalarGridSpec(
                num_scalar_prefetch=0,
                grid=(M,),
                in_specs=[
                    pl.BlockSpec((B, D), lambda m: (0, 0)),               # x2d
                    pl.BlockSpec((1, D), lambda m: (0, 0)),               # mean
                    pl.BlockSpec((1, D), lambda m: (0, 0)),               # 1/std
                    # Squeezed leading (member) dim -> kernel sees (D, K) / (1, K)
                    # directly, no per-step slice copies.
                    pl.BlockSpec((None, D, NUM_CLASSES), lambda m: (m, 0, 0)),
                    pl.BlockSpec((None, 1, NUM_CLASSES), lambda m: (m, 0, 0)),
                ],
                out_specs=pl.BlockSpec((None, B, NUM_CLASSES),
                                       lambda m: (m, 0, 0)),
            ),
            compiler_params=pltpu.CompilerParams(
                dimension_semantics=("parallel",)),
        )(x2d, mean_vec, istd_vec, w_bf16, b3)

    raise NotImplementedError(reduction)


def _reference(x_nchw, weights, biases, reduction="mean"):
    B = x_nchw.shape[0]
    mean = jnp.asarray(CIFAR100_MEAN, jnp.float32).reshape(1, C, 1, 1)
    std = jnp.asarray(CIFAR100_STD, jnp.float32).reshape(1, C, 1, 1)
    xn = ((x_nchw - mean) / std).reshape(B, D)
    logits = jnp.einsum("bd,mdk->mbk", xn, weights) + biases[:, None, :]
    if reduction == "mean":
        return logits.mean(0)
    if reduction == "sum":
        return logits.sum(0)
    return logits


if __name__ == "__main__":
    key = jax.random.PRNGKey(0)
    k_x, k_w, k_b = jax.random.split(key, 3)

    B = 8           # batch
    M = 3           # number of ensemble members ("model_names")

    # Deterministic synthetic inputs / parameters.
    # TODO(synk): real vgg/resnet/... backbones require external checkpoints;
    # each member is a synthetic linear head on the normalized image.
    x = jax.random.uniform(k_x, (B, C, H, W), jnp.float32)          # images in [0,1]
    weights = jax.random.normal(k_w, (M, D, NUM_CLASSES), jnp.float32) * 0.02
    biases = jax.random.normal(k_b, (M, NUM_CLASSES), jnp.float32) * 0.1

    # bf16 weights in the kernel -> ~1e-2-scale absolute deviation vs f32 ref.
    atol, rtol = 5e-2, 5e-2

    out_mean = jax.block_until_ready(
        ensemble_forward(x, weights, biases, reduction="mean"))
    ref_mean = _reference(x, weights, biases, reduction="mean")
    assert out_mean.shape == (B, NUM_CLASSES)
    assert jnp.allclose(out_mean, ref_mean, atol=atol, rtol=rtol), "mean mismatch"

    out_sum = jax.block_until_ready(
        ensemble_forward(x, weights, biases, reduction="sum"))
    ref_sum = _reference(x, weights, biases, reduction="sum")
    assert out_sum.shape == (B, NUM_CLASSES)
    assert jnp.allclose(out_sum, ref_sum, atol=atol, rtol=rtol), "sum mismatch"

    out_none = jax.block_until_ready(
        ensemble_forward(x, weights, biases, reduction="none"))
    ref_none = _reference(x, weights, biases, reduction="none")
    assert out_none.shape == (M, B, NUM_CLASSES)
    assert jnp.allclose(out_none, ref_none, atol=atol, rtol=rtol), "none mismatch"

    print("KERNEL_OK")
</pallas_src>

<mosaic_0001>
module attributes {stable_mosaic.version = 11 : i64} {
  func.func @_ensemble_member_kernel(%arg0: i32, %arg1: memref<8x3072xf32, #tpu.memory_space<vmem>>, %arg2: memref<1x3072xf32, #tpu.memory_space<vmem>>, %arg3: memref<1x3072xf32, #tpu.memory_space<vmem>>, %arg4: memref<3072x100xbf16, #tpu.memory_space<vmem>>, %arg5: memref<1x100xf32, #tpu.memory_space<vmem>>, %arg6: memref<8x100xf32, #tpu.memory_space<vmem>>) attributes {dimension_semantics = [#tpu.dimension_semantics<arbitrary>], iteration_bounds = array<i64: 1>, scalar_prefetch = 0 : i64, scratch_operands = 0 : i64, tpu.core_type = #tpu.core_type<tc>, window_params = [{pipeline_mode = #tpu.pipeline_mode<synchronous>, transform_indices = @transform_0, window_bounds = array<i64: 8, 3072>}, {pipeline_mode = #tpu.pipeline_mode<synchronous>, transform_indices = @transform_1, window_bounds = array<i64: 1, 3072>}, {pipeline_mode = #tpu.pipeline_mode<synchronous>, transform_indices = @transform_2, window_bounds = array<i64: 1, 3072>}, {pipeline_mode = #tpu.pipeline_mode<synchronous>, transform_indices = @transform_3, window_bounds = array<i64: 3072, 100>}, {pipeline_mode = #tpu.pipeline_mode<synchronous>, transform_indices = @transform_4, window_bounds = array<i64: 1, 100>}, {pipeline_mode = #tpu.pipeline_mode<synchronous>, transform_indices = @transform_5, window_bounds = array<i64: 8, 100>}]} {
    %c0 = arith.constant 0 : index
    %c0_0 = arith.constant 0 : index
    %0 = vector.load %arg1[%c0, %c0_0] : memref<8x3072xf32, #tpu.memory_space<vmem>>, vector<8x3072xf32>
    %c0_1 = arith.constant 0 : index
    %c0_2 = arith.constant 0 : index
    %1 = vector.load %arg2[%c0_1, %c0_2] : memref<1x3072xf32, #tpu.memory_space<vmem>>, vector<1x3072xf32>
    %2 = vector.broadcast %1 : vector<1x3072xf32> to vector<8x3072xf32>
    %3 = arith.subf %0, %2 : vector<8x3072xf32>
    %c0_3 = arith.constant 0 : index
    %c0_4 = arith.constant 0 : index
    %4 = vector.load %arg3[%c0_3, %c0_4] : memref<1x3072xf32, #tpu.memory_space<vmem>>, vector<1x3072xf32>
    %5 = vector.broadcast %4 : vector<1x3072xf32> to vector<8x3072xf32>
    %6 = arith.mulf %3, %5 : vector<8x3072xf32>
    %7 = arith.truncf %6 : vector<8x3072xf32> to vector<8x3072xbf16>
    %c0_5 = arith.constant 0 : index
    %c0_6 = arith.constant 0 : index
    %8 = vector.load %arg4[%c0_5, %c0_6] : memref<3072x100xbf16, #tpu.memory_space<vmem>>, vector<3072x100xbf16>
    %cst = arith.constant dense<0.000000e+00> : vector<8x100xf32>
    %9 = tpu.matmul %7, %8, %cst {dimension_numbers = #tpu.dot_dimension_numbers<[1], [0], [0], [1], [0, 0, 1, 1], [], []>} : vector<8x3072xbf16>, vector<3072x100xbf16>, vector<8x100xf32> -> vector<8x100xf32>
    %c0_7 = arith.constant 0 : index
    %c0_8 = arith.constant 0 : index
    %10 = vector.load %arg5[%c0_7, %c0_8] : memref<1x100xf32, #tpu.memory_space<vmem>>, vector<1x100xf32>
    %11 = vector.broadcast %10 : vector<1x100xf32> to vector<8x100xf32>
    %12 = arith.addf %9, %11 : vector<8x100xf32>
    %c0_9 = arith.constant 0 : index
    %c0_10 = arith.constant 0 : index
    %13 = vector.load %arg6[%c0_9, %c0_10] : memref<8x100xf32, #tpu.memory_space<vmem>>, vector<8x100xf32>
    tpu.vector_store %arg6[%c0_9, %c0_10], %12 {strides = array<i32>} : memref<8x100xf32, #tpu.memory_space<vmem>>, vector<8x100xf32>,
    return
  }
  func.func @transform_0(%arg0: i32) -> (i32, i32) {
    %c0_i32 = arith.constant 0 : i32
    %c0_i32_0 = arith.constant 0 : i32
    %c0_i32_1 = arith.constant 0 : i32
    return %c0_i32, %c0_i32_0 : i32, i32
  }
  func.func @transform_1(%arg0: i32) -> (i32, i32) {
    %c0_i32 = arith.constant 0 : i32
    %c0_i32_0 = arith.constant 0 : i32
    %c0_i32_1 = arith.constant 0 : i32
    return %c0_i32, %c0_i32_0 : i32, i32
  }
  func.func @transform_2(%arg0: i32) -> (i32, i32) {
    %c0_i32 = arith.constant 0 : i32
    %c0_i32_0 = arith.constant 0 : i32
    %c0_i32_1 = arith.constant 0 : i32
    return %c0_i32, %c0_i32_0 : i32, i32
  }
  func.func @transform_3(%arg0: i32) -> (i32, i32) {
    %c0_i32 = arith.constant 0 : i32
    %c0_i32_0 = arith.constant 0 : i32
    %c0_i32_1 = arith.constant 0 : i32
    return %c0_i32, %c0_i32_0 : i32, i32
  }
  func.func @transform_4(%arg0: i32) -> (i32, i32) {
    %c0_i32 = arith.constant 0 : i32
    %c0_i32_0 = arith.constant 0 : i32
    %c0_i32_1 = arith.constant 0 : i32
    return %c0_i32, %c0_i32_0 : i32, i32
  }
  func.func @transform_5(%arg0: i32) -> (i32, i32) {
    %c0_i32 = arith.constant 0 : i32
    %c0_i32_0 = arith.constant 0 : i32
    %c0_i32_1 = arith.constant 0 : i32
    return %c0_i32, %c0_i32_0 : i32, i32
  }
}

</mosaic_0001>

<llo_original>
// kernel: tpu_custom_call.1
$region0: #{tpu_custom_call.1}
  #allocation0 [shape = 'u32[]', space=smem, size = 0x4, offset = 0x4, fixed_abs, tag = 'smem constant byte address 0x4 - core index']
  #allocation1 [shape = 'u32[144,128]{1,0:T(1,128)}', space=vmem, size = 0x12000, scoped, tag = 'internal scratch']
  %s0 = inlined_call_operand.vmem [shape: f32[8,3072], index: 0, kind: input, shape index: {}]
  %s1 = inlined_call_operand.vmem [shape: f32[1,3072], index: 1, kind: input, shape index: {}]
  %s2 = inlined_call_operand.vmem [shape: f32[1,3072], index: 2, kind: input, shape index: {}]
  %s3 = inlined_call_operand.vmem [shape: bf16[3072,100], index: 3, kind: input, shape index: {}]
  %s4 = inlined_call_operand.vmem [shape: f32[1,100], index: 4, kind: input, shape index: {}]
  %s5 = inlined_call_operand.hbm [shape: f32[8,100], index: 5, kind: output, shape index: {}]
  %s6 = sld [smem:[#allocation0]]
  $region30: #{tpu_custom_call.1} parent=0
    _
  %s8 = ssub.s32 1, %s6
  %s9 = scalar_select 0, %s8, %s6
  $region1: #{tpu_custom_call.1} parent=0
    #allocation2 [shape = 'u8[4096]{0}', space=vmem, size = 0x1000, scoped, tag = 'output window, operand 0, single buffered']
    #allocation3 [shape = 's32[1]{0}', space=sflag, size = 0x4, scoped, tag = 'scoped memory for tpu_custom_call.1']
    %10 = vsyncpa [#allocation3], 0
    // Predicated region
    $region2: #{tpu_custom_call.1} parent=1 // pred_check
      _
    $region3: #{tpu_custom_call.1} parent=1 // pred_check_branch
      %12 = sbr.rel (0) target = $region5
    $region4: #{tpu_custom_call.1} parent=1 // pred_region
      _
    $region5: #{tpu_custom_call.1} parent=1 // pred_fallthru
      _
    // Predicated region
    $region6: #{tpu_custom_call.1} parent=1 // pred_check
      _
    $region7: #{tpu_custom_call.1} parent=1 // pred_check_branch
      %14 = sbr.rel (0) target = $region9
    $region8: #{tpu_custom_call.1} parent=1 // pred_region
      _
    $region9: #{tpu_custom_call.1} parent=1 // pred_fallthru
      _
    // Predicated region
    $region10: #{tpu_custom_call.1} parent=1 // pred_check
      _
    $region11: #{tpu_custom_call.1} parent=1 // pred_check_branch
      %16 = sbr.rel (0) target = $region13
    $region12: #{tpu_custom_call.1} parent=1 // pred_region
      _
    $region13: #{tpu_custom_call.1} parent=1 // pred_fallthru
      _
    // Predicated region
    $region14: #{tpu_custom_call.1} parent=1 // pred_check
      _
    $region15: #{tpu_custom_call.1} parent=1 // pred_check_branch
      %18 = sbr.rel (0) target = $region17
    $region16: #{tpu_custom_call.1} parent=1 // pred_region
      _
    $region17: #{tpu_custom_call.1} parent=1 // pred_fallthru
      _
    // Predicated region
    $region18: #{tpu_custom_call.1} parent=1 // pred_check
      _
    $region19: #{tpu_custom_call.1} parent=1 // pred_check_branch
      %20 = sbr.rel (0) target = $region21
    $region20: #{tpu_custom_call.1} parent=1 // pred_region
      _
    $region21: #{tpu_custom_call.1} parent=1 // pred_fallthru
      _
    %v22 = vld [vmem:[%s0] sm:$0xff]
    %v23 = vld [vmem:[%s0 + $0x8] sm:$0xff]
    %v24 = vld [vmem:[%s0 + $0x10] sm:$0xff]
    %v25 = vld [vmem:[%s0 + $0x18] sm:$0xff]
    %v26 = vld [vmem:[%s0 + $0x20] sm:$0xff]
    %v27 = vld [vmem:[%s0 + $0x28] sm:$0xff]
    %v28 = vld [vmem:[%s0 + $0x30] sm:$0xff]
    %v29 = vld [vmem:[%s0 + $0x38] sm:$0xff]
    %v30 = vld [vmem:[%s0 + $0x40] sm:$0xff]
    %v31 = vld [vmem:[%s0 + $0x48] sm:$0xff]
    %v32 = vld [vmem:[%s0 + $0x50] sm:$0xff]
    %v33 = vld [vmem:[%s0 + $0x58] sm:$0xff]
    %v34 = vld [vmem:[%s0 + $0x60] sm:$0xff]
    %v35 = vld [vmem:[%s0 + $0x68] sm:$0xff]
    %v36 = vld [vmem:[%s0 + $0x70] sm:$0xff]
    %v37 = vld [vmem:[%s0 + $0x78] sm:$0xff]
    %v38 = vld [vmem:[%s0 + $0x80] sm:$0xff]
    %v39 = vld [vmem:[%s0 + $0x88] sm:$0xff]
    %v40 = vld [vmem:[%s0 + $0x90] sm:$0xff]
    %v41 = vld [vmem:[%s0 + $0x98] sm:$0xff]
    %v42 = vld [vmem:[%s0 + $0xa0] sm:$0xff]
    %v43 = vld [vmem:[%s0 + $0xa8] sm:$0xff]
    %v44 = vld [vmem:[%s0 + $0xb0] sm:$0xff]
    %v45 = vld [vmem:[%s0 + $0xb8] sm:$0xff]
    %v46 = vld [vmem:[%s1] sm:$0xff]
    %v47 = vld [vmem:[%s1 + $0x8] sm:$0xff]
    %v48 = vld [vmem:[%s1 + $0x10] sm:$0xff]
    %v52 = vlaneseq
    %v53 = vshrl.u32 %v52, 7
    %v54 = vsub.s32 0, %v53
    %v55 = vrot.slane %v46, %v54
    %v56 = vlaneseq
    %v57 = vshrl.u32 %v56, 7
    %v58 = vsub.s32 1, %v57
    %v59 = vrot.slane %v46, %v58
    %v60 = vlaneseq
    %v61 = vshrl.u32 %v60, 7
    %v62 = vsub.s32 2, %v61
    %v63 = vrot.slane %v46, %v62
    %v64 = vlaneseq
    %v65 = vshrl.u32 %v64, 7
    %v66 = vsub.s32 3, %v65
    %v67 = vrot.slane %v46, %v66
    %v68 = vlaneseq
    %v69 = vshrl.u32 %v68, 7
    %v70 = vsub.s32 4, %v69
    %v71 = vrot.slane %v46, %v70
    %v72 = vlaneseq
    %v73 = vshrl.u32 %v72, 7
    %v74 = vsub.s32 5, %v73
    %v75 = vrot.slane %v46, %v74
    %v76 = vlaneseq
    %v77 = vshrl.u32 %v76, 7
    %v78 = vsub.s32 6, %v77
    %v79 = vrot.slane %v46, %v78
    %v80 = vlaneseq
    %v81 = vshrl.u32 %v80, 7
    %v82 = vsub.s32 7, %v81
    %v83 = vrot.slane %v46, %v82
    %v84 = vlaneseq
    %v85 = vshrl.u32 %v84, 7
    %v86 = vsub.s32 0, %v85
    %v87 = vrot.slane %v47, %v86
    %v88 = vlaneseq
    %v89 = vshrl.u32 %v88, 7
    %v90 = vsub.s32 1, %v89
    %v91 = vrot.slane %v47, %v90
    %v92 = vlaneseq
    %v93 = vshrl.u32 %v92, 7
    %v94 = vsub.s32 2, %v93
    %v95 = vrot.slane %v47, %v94
    %v96 = vlaneseq
    %v97 = vshrl.u32 %v96, 7
    %v98 = vsub.s32 3, %v97
    %v99 = vrot.slane %v47, %v98
    %v100 = vlaneseq
    %v101 = vshrl.u32 %v100, 7
    %v102 = vsub.s32 4, %v101
    %v103 = vrot.slane %v47, %v102
    %v104 = vlaneseq
    %v105 = vshrl.u32 %v104, 7
    %v106 = vsub.s32 5, %v105
    %v107 = vrot.slane %v47, %v106
    %v108 = vlaneseq
    %v109 = vshrl.u32 %v108, 7
    %v110 = vsub.s32 6, %v109
    %v111 = vrot.slane %v47, %v110
    %v112 = vlaneseq
    %v113 = vshrl.u32 %v112, 7
    %v114 = vsub.s32 7, %v113
    %v115 = vrot.slane %v47, %v114
    %v116 = vlaneseq
    %v117 = vshrl.u32 %v116, 7
    %v118 = vsub.s32 0, %v117
    %v119 = vrot.slane %v48, %v118
    %v120 = vlaneseq
    %v121 = vshrl.u32 %v120, 7
    %v122 = vsub.s32 1, %v121
    %v123 = vrot.slane %v48, %v122
    %v124 = vlaneseq
    %v125 = vshrl.u32 %v124, 7
    %v126 = vsub.s32 2, %v125
    %v127 = vrot.slane %v48, %v126
    %v128 = vlaneseq
    %v129 = vshrl.u32 %v128, 7
    %v130 = vsub.s32 3, %v129
    %v131 = vrot.slane %v48, %v130
    %v132 = vlaneseq
    %v133 = vshrl.u32 %v132, 7
    %v134 = vsub.s32 4, %v133
    %v135 = vrot.slane %v48, %v134
    %v136 = vlaneseq
    %v137 = vshrl.u32 %v136, 7
    %v138 = vsub.s32 5, %v137
    %v139 = vrot.slane %v48, %v138
    %v140 = vlaneseq
    %v141 = vshrl.u32 %v140, 7
    %v142 = vsub.s32 6, %v141
    %v143 = vrot.slane %v48, %v142
    %v144 = vlaneseq
    %v145 = vshrl.u32 %v144, 7
    %v146 = vsub.s32 7, %v145
    %v147 = vrot.slane %v48, %v146
    %v172 = vsub.f32 %v22, %v55
    %v173 = vsub.f32 %v23, %v59
    %v174 = vsub.f32 %v24, %v63
    %v175 = vsub.f32 %v25, %v67
    %v176 = vsub.f32 %v26, %v71
    %v177 = vsub.f32 %v27, %v75
    %v178 = vsub.f32 %v28, %v79
    %v179 = vsub.f32 %v29, %v83
    %v180 = vsub.f32 %v30, %v87
    %v181 = vsub.f32 %v31, %v91
    %v182 = vsub.f32 %v32, %v95
    %v183 = vsub.f32 %v33, %v99
    %v184 = vsub.f32 %v34, %v103
    %v185 = vsub.f32 %v35, %v107
    %v186 = vsub.f32 %v36, %v111
    %v187 = vsub.f32 %v37, %v115
    %v188 = vsub.f32 %v38, %v119
    %v189 = vsub.f32 %v39, %v123
    %v190 = vsub.f32 %v40, %v127
    %v191 = vsub.f32 %v41, %v131
    %v192 = vsub.f32 %v42, %v135
    %v193 = vsub.f32 %v43, %v139
    %v194 = vsub.f32 %v44, %v143
    %v195 = vsub.f32 %v45, %v147
    %v196 = vld [vmem:[%s2] sm:$0xff]
    %v197 = vld [vmem:[%s2 + $0x8] sm:$0xff]
    %v198 = vld [vmem:[%s2 + $0x10] sm:$0xff]
    %v202 = vlaneseq
    %v203 = vshrl.u32 %v202, 7
    %v204 = vsub.s32 0, %v203
    %v205 = vrot.slane %v196, %v204
    %v206 = vlaneseq
    %v207 = vshrl.u32 %v206, 7
    %v208 = vsub.s32 1, %v207
    %v209 = vrot.slane %v196, %v208
    %v210 = vlaneseq
    %v211 = vshrl.u32 %v210, 7
    %v212 = vsub.s32 2, %v211
    %v213 = vrot.slane %v196, %v212
    %v214 = vlaneseq
    %v215 = vshrl.u32 %v214, 7
    %v216 = vsub.s32 3, %v215
    %v217 = vrot.slane %v196, %v216
    %v218 = vlaneseq
    %v219 = vshrl.u32 %v218, 7
    %v220 = vsub.s32 4, %v219
    %v221 = vrot.slane %v196, %v220
    %v222 = vlaneseq
    %v223 = vshrl.u32 %v222, 7
    %v224 = vsub.s32 5, %v223
    %v225 = vrot.slane %v196, %v224
    %v226 = vlaneseq
    %v227 = vshrl.u32 %v226, 7
    %v228 = vsub.s32 6, %v227
    %v229 = vrot.slane %v196, %v228
    %v230 = vlaneseq
    %v231 = vshrl.u32 %v230, 7
    %v232 = vsub.s32 7, %v231
    %v233 = vrot.slane %v196, %v232
    %v234 = vlaneseq
    %v235 = vshrl.u32 %v234, 7
    %v236 = vsub.s32 0, %v235
    %v237 = vrot.slane %v197, %v236
    %v238 = vlaneseq
    %v239 = vshrl.u32 %v238, 7
    %v240 = vsub.s32 1, %v239
    %v241 = vrot.slane %v197, %v240
    %v242 = vlaneseq
    %v243 = vshrl.u32 %v242, 7
    %v244 = vsub.s32 2, %v243
    %v245 = vrot.slane %v197, %v244
    %v246 = vlaneseq
    %v247 = vshrl.u32 %v246, 7
    %v248 = vsub.s32 3, %v247
    %v249 = vrot.slane %v197, %v248
    %v250 = vlaneseq
    %v251 = vshrl.u32 %v250, 7
    %v252 = vsub.s32 4, %v251
    %v253 = vrot.slane %v197, %v252
    %v254 = vlaneseq
    %v255 = vshrl.u32 %v254, 7
    %v256 = vsub.s32 5, %v255
    %v257 = vrot.slane %v197, %v256
    %v258 = vlaneseq
    %v259 = vshrl.u32 %v258, 7
    %v260 = vsub.s32 6, %v259
    %v261 = vrot.slane %v197, %v260
    %v262 = vlaneseq
    %v263 = vshrl.u32 %v262, 7
    %v264 = vsub.s32 7, %v263
    %v265 = vrot.slane %v197, %v264
    %v266 = vlaneseq
    %v267 = vshrl.u32 %v266, 7
    %v268 = vsub.s32 0, %v267
    %v269 = vrot.slane %v198, %v268
    %v270 = vlaneseq
    %v271 = vshrl.u32 %v270, 7
    %v272 = vsub.s32 1, %v271
    %v273 = vrot.slane %v198, %v272
    %v274 = vlaneseq
    %v275 = vshrl.u32 %v274, 7
    %v276 = vsub.s32 2, %v275
    %v277 = vrot.slane %v198, %v276
    %v278 = vlaneseq
    %v279 = vshrl.u32 %v278, 7
    %v280 = vsub.s32 3, %v279
    %v281 = vrot.slane %v198, %v280
    %v282 = vlaneseq
    %v283 = vshrl.u32 %v282, 7
    %v284 = vsub.s32 4, %v283
    %v285 = vrot.slane %v198, %v284
    %v286 = vlaneseq
    %v287 = vshrl.u32 %v286, 7
    %v288 = vsub.s32 5, %v287
    %v289 = vrot.slane %v198, %v288
    %v290 = vlaneseq
    %v291 = vshrl.u32 %v290, 7
    %v292 = vsub.s32 6, %v291
    %v293 = vrot.slane %v198, %v292
    %v294 = vlaneseq
    %v295 = vshrl.u32 %v294, 7
    %v296 = vsub.s32 7, %v295
    %v297 = vrot.slane %v198, %v296
    %v322 = vmul.f32 %v172, %v205
    %v323 = vmul.f32 %v173, %v209
    %v324 = vmul.f32 %v174, %v213
    %v325 = vmul.f32 %v175, %v217
    %v326 = vmul.f32 %v176, %v221
    %v327 = vmul.f32 %v177, %v225
    %v328 = vmul.f32 %v178, %v229
    %v329 = vmul.f32 %v179, %v233
    %v330 = vmul.f32 %v180, %v237
    %v331 = vmul.f32 %v181, %v241
    %v332 = vmul.f32 %v182, %v245
    %v333 = vmul.f32 %v183, %v249
    %v334 = vmul.f32 %v184, %v253
    %v335 = vmul.f32 %v185, %v257
    %v336 = vmul.f32 %v186, %v261
    %v337 = vmul.f32 %v187, %v265
    %v338 = vmul.f32 %v188, %v269
    %v339 = vmul.f32 %v189, %v273
    %v340 = vmul.f32 %v190, %v277
    %v341 = vmul.f32 %v191, %v281
    %v342 = vmul.f32 %v192, %v285
    %v343 = vmul.f32 %v193, %v289
    %v344 = vmul.f32 %v194, %v293
    %v345 = vmul.f32 %v195, %v297
    %v346 = vpack.c.bf16 %v322, %v322
    %v347 = vpack.c.bf16 %v323, %v323
    %v348 = vpack.c.bf16 %v324, %v324
    %v349 = vpack.c.bf16 %v325, %v325
    %v350 = vpack.c.bf16 %v326, %v326
    %v351 = vpack.c.bf16 %v327, %v327
    %v352 = vpack.c.bf16 %v328, %v328
    %v353 = vpack.c.bf16 %v329, %v329
    %v354 = vpack.c.bf16 %v330, %v330
    %v355 = vpack.c.bf16 %v331, %v331
    %v356 = vpack.c.bf16 %v332, %v332
    %v357 = vpack.c.bf16 %v333, %v333
    %v358 = vpack.c.bf16 %v334, %v334
    %v359 = vpack.c.bf16 %v335, %v335
    %v360 = vpack.c.bf16 %v336, %v336
    %v361 = vpack.c.bf16 %v337, %v337
    %v362 = vpack.c.bf16 %v338, %v338
    %v363 = vpack.c.bf16 %v339, %v339
    %v364 = vpack.c.bf16 %v340, %v340
    %v365 = vpack.c.bf16 %v341, %v341
    %v366 = vpack.c.bf16 %v342, %v342
    %v367 = vpack.c.bf16 %v343, %v343
    %v368 = vpack.c.bf16 %v344, %v344
    %v369 = vpack.c.bf16 %v345, %v345
    %v370 = vld [vmem:[%s3] sm:$0xf]
    %v371 = vld [vmem:[%s3 + $0x4] sm:$0xf]
    %v372 = vld [vmem:[%s3 + $0x8] sm:$0xf]
    %v373 = vld [vmem:[%s3 + $0xc] sm:$0xf]
    %v374 = vld [vmem:[%s3 + $0x10] sm:$0xf]
    %v375 = vld [vmem:[%s3 + $0x14] sm:$0xf]
    %v376 = vld [vmem:[%s3 + $0x18] sm:$0xf]
    %v377 = vld [vmem:[%s3 + $0x1c] sm:$0xf]
    %v378 = vld [vmem:[%s3 + $0x20] sm:$0xf]
    %v379 = vld [vmem:[%s3 + $0x24] sm:$0xf]
    %v380 = vld [vmem:[%s3 + $0x28] sm:$0xf]
    %v381 = vld [vmem:[%s3 + $0x2c] sm:$0xf]
    %v382 = vld [vmem:[%s3 + $0x30] sm:$0xf]
    %v383 = vld [vmem:[%s3 + $0x34] sm:$0xf]
    %v384 = vld [vmem:[%s3 + $0x38] sm:$0xf]
    %v385 = vld [vmem:[%s3 + $0x3c] sm:$0xf]
    %v386 = vld [vmem:[%s3 + $0x40] sm:$0xf]
    %v387 = vld [vmem:[%s3 + $0x44] sm:$0xf]
    %v388 = vld [vmem:[%s3 + $0x48] sm:$0xf]
    %v389 = vld [vmem:[%s3 + $0x4c] sm:$0xf]
    %v390 = vld [vmem:[%s3 + $0x50] sm:$0xf]
    %v391 = vld [vmem:[%s3 + $0x54] sm:$0xf]
    %v392 = vld [vmem:[%s3 + $0x58] sm:$0xf]
    %v393 = vld [vmem:[%s3 + $0x5c] sm:$0xf]
    %v394 = vld [vmem:[%s3 + $0x60] sm:$0xf]
    %v395 = vld [vmem:[%s3 + $0x64] sm:$0xf]
    %v396 = vld [vmem:[%s3 + $0x68] sm:$0xf]
    %v397 = vld [vmem:[%s3 + $0x6c] sm:$0xf]
    %v398 = vld [vmem:[%s3 + $0x70] sm:$0xf]
    %v399 = vld [vmem:[%s3 + $0x74] sm:$0xf]
    %v400 = vld [vmem:[%s3 + $0x78] sm:$0xf]
    %v401 = vld [vmem:[%s3 + $0x7c] sm:$0xf]
    %v402 = vld [vmem:[%s3 + $0x80] sm:$0xf]
    %v403 = vld [vmem:[%s3 + $0x84] sm:$0xf]
    %v404 = vld [vmem:[%s3 + $0x88] sm:$0xf]
    %v405 = vld [vmem:[%s3 + $0x8c] sm:$0xf]
    %v406 = vld [vmem:[%s3 + $0x90] sm:$0xf]
    %v407 = vld [vmem:[%s3 + $0x94] sm:$0xf]
    %v408 = vld [vmem:[%s3 + $0x98] sm:$0xf]
    %v409 = vld [vmem:[%s3 + $0x9c] sm:$0xf]
    %v410 = vld [vmem:[%s3 + $0xa0] sm:$0xf]
    %v411 = vld [vmem:[%s3 + $0xa4] sm:$0xf]
    %v412 = vld [vmem:[%s3 + $0xa8] sm:$0xf]
    %v413 = vld [vmem:[%s3 + $0xac] sm:$0xf]
    %v414 = vld [vmem:[%s3 + $0xb0] sm:$0xf]
    %v415 = vld [vmem:[%s3 + $0xb4] sm:$0xf]
    %v416 = vld [vmem:[%s3 + $0xb8] sm:$0xf]
    %v417 = vld [vmem:[%s3 + $0xbc] sm:$0xf]
    %v418 = vld [vmem:[%s3 + $0xc0] sm:$0xf]
    %v419 = vld [vmem:[%s3 + $0xc4] sm:$0xf]
    %v420 = vld [vmem:[%s3 + $0xc8] sm:$0xf]
    %v421 = vld [vmem:[%s3 + $0xcc] sm:$0xf]
    %v422 = vld [vmem:[%s3 + $0xd0] sm:$0xf]
    %v423 = vld [vmem:[%s3 + $0xd4] sm:$0xf]
    %v424 = vld [vmem:[%s3 + $0xd8] sm:$0xf]
    %v425 = vld [vmem:[%s3 + $0xdc] sm:$0xf]
    %v426 = vld [vmem:[%s3 + $0xe0] sm:$0xf]
    %v427 = vld [vmem:[%s3 + $0xe4] sm:$0xf]
    %v428 = vld [vmem:[%s3 + $0xe8] sm:$0xf]
    %v429 = vld [vmem:[%s3 + $0xec] sm:$0xf]
    %v430 = vld [vmem:[%s3 + $0xf0] sm:$0xf]
    %v431 = vld [vmem:[%s3 + $0xf4] sm:$0xf]
    %v432 = vld [vmem:[%s3 + $0xf8] sm:$0xf]
    %v433 = vld [vmem:[%s3 + $0xfc] sm:$0xf]
    %v434 = vld [vmem:[%s3 + $0x100] sm:$0xf]
    %v435 = vld [vmem:[%s3 + $0x104] sm:$0xf]
    %v436 = vld [vmem:[%s3 + $0x108] sm:$0xf]
    %v437 = vld [vmem:[%s3 + $0x10c] sm:$0xf]
    %v438 = vld [vmem:[%s3 + $0x110] sm:$0xf]
    %v439 = vld [vmem:[%s3 + $0x114] sm:$0xf]
    %v440 = vld [vmem:[%s3 + $0x118] sm:$0xf]
    %v441 = vld [vmem:[%s3 + $0x11c] sm:$0xf]
    %v442 = vld [vmem:[%s3 + $0x120] sm:$0xf]
    %v443 = vld [vmem:[%s3 + $0x124] sm:$0xf]
    %v444 = vld [vmem:[%s3 + $0x128] sm:$0xf]
    %v445 = vld [vmem:[%s3 + $0x12c] sm:$0xf]
    %v446 = vld [vmem:[%s3 + $0x130] sm:$0xf]
    %v447 = vld [vmem:[%s3 + $0x134] sm:$0xf]
    %v448 = vld [vmem:[%s3 + $0x138] sm:$0xf]
    %v449 = vld [vmem:[%s3 + $0x13c] sm:$0xf]
    %v450 = vld [vmem:[%s3 + $0x140] sm:$0xf]
    %v451 = vld [vmem:[%s3 + $0x144] sm:$0xf]
    %v452 = vld [vmem:[%s3 + $0x148] sm:$0xf]
    %v453 = vld [vmem:[%s3 + $0x14c] sm:$0xf]
    %v454 = vld [vmem:[%s3 + $0x150] sm:$0xf]
    %v455 = vld [vmem:[%s3 + $0x154] sm:$0xf]
    %v456 = vld [vmem:[%s3 + $0x158] sm:$0xf]
    %v457 = vld [vmem:[%s3 + $0x15c] sm:$0xf]
    %v458 = vld [vmem:[%s3 + $0x160] sm:$0xf]
    %v459 = vld [vmem:[%s3 + $0x164] sm:$0xf]
    %v460 = vld [vmem:[%s3 + $0x168] sm:$0xf]
    %v461 = vld [vmem:[%s3 + $0x16c] sm:$0xf]
    %v462 = vld [vmem:[%s3 + $0x170] sm:$0xf]
    %v463 = vld [vmem:[%s3 + $0x174] sm:$0xf]
    %v464 = vld [vmem:[%s3 + $0x178] sm:$0xf]
    %v465 = vld [vmem:[%s3 + $0x17c] sm:$0xf]
    %v466 = vld [vmem:[%s3 + $0x180] sm:$0xf]
    %v467 = vld [vmem:[%s3 + $0x184] sm:$0xf]
    %v468 = vld [vmem:[%s3 + $0x188] sm:$0xf]
    %v469 = vld [vmem:[%s3 + $0x18c] sm:$0xf]
    %v470 = vld [vmem:[%s3 + $0x190] sm:$0xf]
    %v471 = vld [vmem:[%s3 + $0x194] sm:$0xf]
    %v472 = vld [vmem:[%s3 + $0x198] sm:$0xf]
    %v473 = vld [vmem:[%s3 + $0x19c] sm:$0xf]
    %v474 = vld [vmem:[%s3 + $0x1a0] sm:$0xf]
    %v475 = vld [vmem:[%s3 + $0x1a4] sm:$0xf]
    %v476 = vld [vmem:[%s3 + $0x1a8] sm:$0xf]
    %v477 = vld [vmem:[%s3 + $0x1ac] sm:$0xf]
    %v478 = vld [vmem:[%s3 + $0x1b0] sm:$0xf]
    %v479 = vld [vmem:[%s3 + $0x1b4] sm:$0xf]
    %v480 = vld [vmem:[%s3 + $0x1b8] sm:$0xf]
    %v481 = vld [vmem:[%s3 + $0x1bc] sm:$0xf]
    %v482 = vld [vmem:[%s3 + $0x1c0] sm:$0xf]
    %v483 = vld [vmem:[%s3 + $0x1c4] sm:$0xf]
    %v484 = vld [vmem:[%s3 + $0x1c8] sm:$0xf]
    %v485 = vld [vmem:[%s3 + $0x1cc] sm:$0xf]
    %v486 = vld [vmem:[%s3 + $0x1d0] sm:$0xf]
    %v487 = vld [vmem:[%s3 + $0x1d4] sm:$0xf]
    %v488 = vld [vmem:[%s3 + $0x1d8] sm:$0xf]
    %v489 = vld [vmem:[%s3 + $0x1dc] sm:$0xf]
    %v490 = vld [vmem:[%s3 + $0x1e0] sm:$0xf]
    %v491 = vld [vmem:[%s3 + $0x1e4] sm:$0xf]
    %v492 = vld [vmem:[%s3 + $0x1e8] sm:$0xf]
    %v493 = vld [vmem:[%s3 + $0x1ec] sm:$0xf]
    %v494 = vld [vmem:[%s3 + $0x1f0] sm:$0xf]
    %v495 = vld [vmem:[%s3 + $0x1f4] sm:$0xf]
    %v496 = vld [vmem:[%s3 + $0x1f8] sm:$0xf]
    %v497 = vld [vmem:[%s3 + $0x1fc] sm:$0xf]
    %v498 = vld [vmem:[%s3 + $0x200] sm:$0xf]
    %v499 = vld [vmem:[%s3 + $0x204] sm:$0xf]
    %v500 = vld [vmem:[%s3 + $0x208] sm:$0xf]
    %v501 = vld [vmem:[%s3 + $0x20c] sm:$0xf]
    %v502 = vld [vmem:[%s3 + $0x210] sm:$0xf]
    %v503 = vld [vmem:[%s3 + $0x214] sm:$0xf]
    %v504 = vld [vmem:[%s3 + $0x218] sm:$0xf]
    %v505 = vld [vmem:[%s3 + $0x21c] sm:$0xf]
    %v506 = vld [vmem:[%s3 + $0x220] sm:$0xf]
    %v507 = vld [vmem:[%s3 + $0x224] sm:$0xf]
    %v508 = vld [vmem:[%s3 + $0x228] sm:$0xf]
    %v509 = vld [vmem:[%s3 + $0x22c] sm:$0xf]
    %v510 = vld [vmem:[%s3 + $0x230] sm:$0xf]
    %v511 = vld [vmem:[%s3 + $0x234] sm:$0xf]
    %v512 = vld [vmem:[%s3 + $0x238] sm:$0xf]
    %v513 = vld [vmem:[%s3 + $0x23c] sm:$0xf]
    %v514 = vld [vmem:[%s3 + $0x240] sm:$0xf]
    %v515 = vld [vmem:[%s3 + $0x244] sm:$0xf]
    %v516 = vld [vmem:[%s3 + $0x248] sm:$0xf]
    %v517 = vld [vmem:[%s3 + $0x24c] sm:$0xf]
    %v518 = vld [vmem:[%s3 + $0x250] sm:$0xf]
    %v519 = vld [vmem:[%s3 + $0x254] sm:$0xf]
    %v520 = vld [vmem:[%s3 + $0x258] sm:$0xf]
    %v521 = vld [vmem:[%s3 + $0x25c] sm:$0xf]
    %v522 = vld [vmem:[%s3 + $0x260] sm:$0xf]
    %v523 = vld [vmem:[%s3 + $0x264] sm:$0xf]
    %v524 = vld [vmem:[%s3 + $0x268] sm:$0xf]
    %v525 = vld [vmem:[%s3 + $0x26c] sm:$0xf]
    %v526 = vld [vmem:[%s3 + $0x270] sm:$0xf]
    %v527 = vld [vmem:[%s3 + $0x274] sm:$0xf]
    %v528 = vld [vmem:[%s3 + $0x278] sm:$0xf]
    %v529 = vld [vmem:[%s3 + $0x27c] sm:$0xf]
    %v530 = vld [vmem:[%s3 + $0x280] sm:$0xf]
    %v531 = vld [vmem:[%s3 + $0x284] sm:$0xf]
    %v532 = vld [vmem:[%s3 + $0x288] sm:$0xf]
    %v533 = vld [vmem:[%s3 + $0x28c] sm:$0xf]
    %v534 = vld [vmem:[%s3 + $0x290] sm:$0xf]
    %v535 = vld [vmem:[%s3 + $0x294] sm:$0xf]
    %v536 = vld [vmem:[%s3 + $0x298] sm:$0xf]
    %v537 = vld [vmem:[%s3 + $0x29c] sm:$0xf]
    %v538 = vld [vmem:[%s3 + $0x2a0] sm:$0xf]
    %v539 = vld [vmem:[%s3 + $0x2a4] sm:$0xf]
    %v540 = vld [vmem:[%s3 + $0x2a8] sm:$0xf]
    %v541 = vld [vmem:[%s3 + $0x2ac] sm:$0xf]
    %v542 = vld [vmem:[%s3 + $0x2b0] sm:$0xf]
    %v543 = vld [vmem:[%s3 + $0x2b4] sm:$0xf]
    %v544 = vld [vmem:[%s3 + $0x2b8] sm:$0xf]
    %v545 = vld [vmem:[%s3 + $0x2bc] sm:$0xf]
    %v546 = vld [vmem:[%s3 + $0x2c0] sm:$0xf]
    %v547 = vld [vmem:[%s3 + $0x2c4] sm:$0xf]
    %v548 = vld [vmem:[%s3 + $0x2c8] sm:$0xf]
    %v549 = vld [vmem:[%s3 + $0x2cc] sm:$0xf]
    %v550 = vld [vmem:[%s3 + $0x2d0] sm:$0xf]
    %v551 = vld [vmem:[%s3 + $0x2d4] sm:$0xf]
    %v552 = vld [vmem:[%s3 + $0x2d8] sm:$0xf]
    %v553 = vld [vmem:[%s3 + $0x2dc] sm:$0xf]
    %v554 = vld [vmem:[%s3 + $0x2e0] sm:$0xf]
    %v555 = vld [vmem:[%s3 + $0x2e4] sm:$0xf]
    %v556 = vld [vmem:[%s3 + $0x2e8] sm:$0xf]
    %v557 = vld [vmem:[%s3 + $0x2ec] sm:$0xf]
    %v558 = vld [vmem:[%s3 + $0x2f0] sm:$0xf]
    %v559 = vld [vmem:[%s3 + $0x2f4] sm:$0xf]
    %v560 = vld [vmem:[%s3 + $0x2f8] sm:$0xf]
    %v561 = vld [vmem:[%s3 + $0x2fc] sm:$0xf]
    %v562 = vld [vmem:[%s3 + $0x300] sm:$0xf]
    %v563 = vld [vmem:[%s3 + $0x304] sm:$0xf]
    %v564 = vld [vmem:[%s3 + $0x308] sm:$0xf]
    %v565 = vld [vmem:[%s3 + $0x30c] sm:$0xf]
    %v566 = vld [vmem:[%s3 + $0x310] sm:$0xf]
    %v567 = vld [vmem:[%s3 + $0x314] sm:$0xf]
    %v568 = vld [vmem:[%s3 + $0x318] sm:$0xf]
    %v569 = vld [vmem:[%s3 + $0x31c] sm:$0xf]
    %v570 = vld [vmem:[%s3 + $0x320] sm:$0xf]
    %v571 = vld [vmem:[%s3 + $0x324] sm:$0xf]
    %v572 = vld [vmem:[%s3 + $0x328] sm:$0xf]
    %v573 = vld [vmem:[%s3 + $0x32c] sm:$0xf]
    %v574 = vld [vmem:[%s3 + $0x330] sm:$0xf]
    %v575 = vld [vmem:[%s3 + $0x334] sm:$0xf]
    %v576 = vld [vmem:[%s3 + $0x338] sm:$0xf]
    %v577 = vld [vmem:[%s3 + $0x33c] sm:$0xf]
    %v578 = vld [vmem:[%s3 + $0x340] sm:$0xf]
    %v579 = vld [vmem:[%s3 + $0x344] sm:$0xf]
    %v580 = vld [vmem:[%s3 + $0x348] sm:$0xf]
    %v581 = vld [vmem:[%s3 + $0x34c] sm:$0xf]
    %v582 = vld [vmem:[%s3 + $0x350] sm:$0xf]
    %v583 = vld [vmem:[%s3 + $0x354] sm:$0xf]
    %v584 = vld [vmem:[%s3 + $0x358] sm:$0xf]
    %v585 = vld [vmem:[%s3 + $0x35c] sm:$0xf]
    %v586 = vld [vmem:[%s3 + $0x360] sm:$0xf]
    %v587 = vld [vmem:[%s3 + $0x364] sm:$0xf]
    %v588 = vld [vmem:[%s3 + $0x368] sm:$0xf]
    %v589 = vld [vmem:[%s3 + $0x36c] sm:$0xf]
    %v590 = vld [vmem:[%s3 + $0x370] sm:$0xf]
    %v591 = vld [vmem:[%s3 + $0x374] sm:$0xf]
    %v592 = vld [vmem:[%s3 + $0x378] sm:$0xf]
    %v593 = vld [vmem:[%s3 + $0x37c] sm:$0xf]
    %v594 = vld [vmem:[%s3 + $0x380] sm:$0xf]
    %v595 = vld [vmem:[%s3 + $0x384] sm:$0xf]
    %v596 = vld [vmem:[%s3 + $0x388] sm:$0xf]
    %v597 = vld [vmem:[%s3 + $0x38c] sm:$0xf]
    %v598 = vld [vmem:[%s3 + $0x390] sm:$0xf]
    %v599 = vld [vmem:[%s3 + $0x394] sm:$0xf]
    %v600 = vld [vmem:[%s3 + $0x398] sm:$0xf]
    %v601 = vld [vmem:[%s3 + $0x39c] sm:$0xf]
    %v602 = vld [vmem:[%s3 + $0x3a0] sm:$0xf]
    %v603 = vld [vmem:[%s3 + $0x3a4] sm:$0xf]
    %v604 = vld [vmem:[%s3 + $0x3a8] sm:$0xf]
    %v605 = vld [vmem:[%s3 + $0x3ac] sm:$0xf]
    %v606 = vld [vmem:[%s3 + $0x3b0] sm:$0xf]
    %v607 = vld [vmem:[%s3 + $0x3b4] sm:$0xf]
    %v608 = vld [vmem:[%s3 + $0x3b8] sm:$0xf]
    %v609 = vld [vmem:[%s3 + $0x3bc] sm:$0xf]
    %v610 = vld [vmem:[%s3 + $0x3c0] sm:$0xf]
    %v611 = vld [vmem:[%s3 + $0x3c4] sm:$0xf]
    %v612 = vld [vmem:[%s3 + $0x3c8] sm:$0xf]
    %v613 = vld [vmem:[%s3 + $0x3cc] sm:$0xf]
    %v614 = vld [vmem:[%s3 + $0x3d0] sm:$0xf]
    %v615 = vld [vmem:[%s3 + $0x3d4] sm:$0xf]
    %v616 = vld [vmem:[%s3 + $0x3d8] sm:$0xf]
    %v617 = vld [vmem:[%s3 + $0x3dc] sm:$0xf]
    %v618 = vld [vmem:[%s3 + $0x3e0] sm:$0xf]
    %v619 = vld [vmem:[%s3 + $0x3e4] sm:$0xf]
    %v620 = vld [vmem:[%s3 + $0x3e8] sm:$0xf]
    %v621 = vld [vmem:[%s3 + $0x3ec] sm:$0xf]
    %v622 = vld [vmem:[%s3 + $0x3f0] sm:$0xf]
    %v623 = vld [vmem:[%s3 + $0x3f4] sm:$0xf]
    %v624 = vld [vmem:[%s3 + $0x3f8] sm:$0xf]
    %v625 = vld [vmem:[%s3 + $0x3fc] sm:$0xf]
    %v626 = vld [vmem:[%s3 + $0x400] sm:$0xf]
    %v627 = vld [vmem:[%s3 + $0x404] sm:$0xf]
    %v628 = vld [vmem:[%s3 + $0x408] sm:$0xf]
    %v629 = vld [vmem:[%s3 + $0x40c] sm:$0xf]
    %v630 = vld [vmem:[%s3 + $0x410] sm:$0xf]
    %v631 = vld [vmem:[%s3 + $0x414] sm:$0xf]
    %v632 = vld [vmem:[%s3 + $0x418] sm:$0xf]
    %v633 = vld [vmem:[%s3 + $0x41c] sm:$0xf]
    %v634 = vld [vmem:[%s3 + $0x420] sm:$0xf]
    %v635 = vld [vmem:[%s3 + $0x424] sm:$0xf]
    %v636 = vld [vmem:[%s3 + $0x428] sm:$0xf]
    %v637 = vld [vmem:[%s3 + $0x42c] sm:$0xf]
    %v638 = vld [vmem:[%s3 + $0x430] sm:$0xf]
    %v639 = vld [vmem:[%s3 + $0x434] sm:$0xf]
    %v640 = vld [vmem:[%s3 + $0x438] sm:$0xf]
    %v641 = vld [vmem:[%s3 + $0x43c] sm:$0xf]
    %v642 = vld [vmem:[%s3 + $0x440] sm:$0xf]
    %v643 = vld [vmem:[%s3 + $0x444] sm:$0xf]
    %v644 = vld [vmem:[%s3 + $0x448] sm:$0xf]
    %v645 = vld [vmem:[%s3 + $0x44c] sm:$0xf]
    %v646 = vld [vmem:[%s3 + $0x450] sm:$0xf]
    %v647 = vld [vmem:[%s3 + $0x454] sm:$0xf]
    %v648 = vld [vmem:[%s3 + $0x458] sm:$0xf]
    %v649 = vld [vmem:[%s3 + $0x45c] sm:$0xf]
    %v650 = vld [vmem:[%s3 + $0x460] sm:$0xf]
    %v651 = vld [vmem:[%s3 + $0x464] sm:$0xf]
    %v652 = vld [vmem:[%s3 + $0x468] sm:$0xf]
    %v653 = vld [vmem:[%s3 + $0x46c] sm:$0xf]
    %v654 = vld [vmem:[%s3 + $0x470] sm:$0xf]
    %v655 = vld [vmem:[%s3 + $0x474] sm:$0xf]
    %v656 = vld [vmem:[%s3 + $0x478] sm:$0xf]
    %v657 = vld [vmem:[%s3 + $0x47c] sm:$0xf]
    %v658 = vld [vmem:[%s3 + $0x480] sm:$0xf]
    %v659 = vld [vmem:[%s3 + $0x484] sm:$0xf]
    %v660 = vld [vmem:[%s3 + $0x488] sm:$0xf]
    %v661 = vld [vmem:[%s3 + $0x48c] sm:$0xf]
    %v662 = vld [vmem:[%s3 + $0x490] sm:$0xf]
    %v663 = vld [vmem:[%s3 + $0x494] sm:$0xf]
    %v664 = vld [vmem:[%s3 + $0x498] sm:$0xf]
    %v665 = vld [vmem:[%s3 + $0x49c] sm:$0xf]
    %v666 = vld [vmem:[%s3 + $0x4a0] sm:$0xf]
    %v667 = vld [vmem:[%s3 + $0x4a4] sm:$0xf]
    %v668 = vld [vmem:[%s3 + $0x4a8] sm:$0xf]
    %v669 = vld [vmem:[%s3 + $0x4ac] sm:$0xf]
    %v670 = vld [vmem:[%s3 + $0x4b0] sm:$0xf]
    %v671 = vld [vmem:[%s3 + $0x4b4] sm:$0xf]
    %v672 = vld [vmem:[%s3 + $0x4b8] sm:$0xf]
    %v673 = vld [vmem:[%s3 + $0x4bc] sm:$0xf]
    %v674 = vld [vmem:[%s3 + $0x4c0] sm:$0xf]
    %v675 = vld [vmem:[%s3 + $0x4c4] sm:$0xf]
    %v676 = vld [vmem:[%s3 + $0x4c8] sm:$0xf]
    %v677 = vld [vmem:[%s3 + $0x4cc] sm:$0xf]
    %v678 = vld [vmem:[%s3 + $0x4d0] sm:$0xf]
    %v679 = vld [vmem:[%s3 + $0x4d4] sm:$0xf]
    %v680 = vld [vmem:[%s3 + $0x4d8] sm:$0xf]
    %v681 = vld [vmem:[%s3 + $0x4dc] sm:$0xf]
    %v682 = vld [vmem:[%s3 + $0x4e0] sm:$0xf]
    %v683 = vld [vmem:[%s3 + $0x4e4] sm:$0xf]
    %v684 = vld [vmem:[%s3 + $0x4e8] sm:$0xf]
    %v685 = vld [vmem:[%s3 + $0x4ec] sm:$0xf]
    %v686 = vld [vmem:[%s3 + $0x4f0] sm:$0xf]
    %v687 = vld [vmem:[%s3 + $0x4f4] sm:$0xf]
    %v688 = vld [vmem:[%s3 + $0x4f8] sm:$0xf]
    %v689 = vld [vmem:[%s3 + $0x4fc] sm:$0xf]
    %v690 = vld [vmem:[%s3 + $0x500] sm:$0xf]
    %v691 = vld [vmem:[%s3 + $0x504] sm:$0xf]
    %v692 = vld [vmem:[%s3 + $0x508] sm:$0xf]
    %v693 = vld [vmem:[%s3 + $0x50c] sm:$0xf]
    %v694 = vld [vmem:[%s3 + $0x510] sm:$0xf]
    %v695 = vld [vmem:[%s3 + $0x514] sm:$0xf]
    %v696 = vld [vmem:[%s3 + $0x518] sm:$0xf]
    %v697 = vld [vmem:[%s3 + $0x51c] sm:$0xf]
    %v698 = vld [vmem:[%s3 + $0x520] sm:$0xf]
    %v699 = vld [vmem:[%s3 + $0x524] sm:$0xf]
    %v700 = vld [vmem:[%s3 + $0x528] sm:$0xf]
    %v701 = vld [vmem:[%s3 + $0x52c] sm:$0xf]
    %v702 = vld [vmem:[%s3 + $0x530] sm:$0xf]
    %v703 = vld [vmem:[%s3 + $0x534] sm:$0xf]
    %v704 = vld [vmem:[%s3 + $0x538] sm:$0xf]
    %v705 = vld [vmem:[%s3 + $0x53c] sm:$0xf]
    %v706 = vld [vmem:[%s3 + $0x540] sm:$0xf]
    %v707 = vld [vmem:[%s3 + $0x544] sm:$0xf]
    %v708 = vld [vmem:[%s3 + $0x548] sm:$0xf]
    %v709 = vld [vmem:[%s3 + $0x54c] sm:$0xf]
    %v710 = vld [vmem:[%s3 + $0x550] sm:$0xf]
    %v711 = vld [vmem:[%s3 + $0x554] sm:$0xf]
    %v712 = vld [vmem:[%s3 + $0x558] sm:$0xf]
    %v713 = vld [vmem:[%s3 + $0x55c] sm:$0xf]
    %v714 = vld [vmem:[%s3 + $0x560] sm:$0xf]
    %v715 = vld [vmem:[%s3 + $0x564] sm:$0xf]
    %v716 = vld [vmem:[%s3 + $0x568] sm:$0xf]
    %v717 = vld [vmem:[%s3 + $0x56c] sm:$0xf]
    %v718 = vld [vmem:[%s3 + $0x570] sm:$0xf]
    %v719 = vld [vmem:[%s3 + $0x574] sm:$0xf]
    %v720 = vld [vmem:[%s3 + $0x578] sm:$0xf]
    %v721 = vld [vmem:[%s3 + $0x57c] sm:$0xf]
    %v722 = vld [vmem:[%s3 + $0x580] sm:$0xf]
    %v723 = vld [vmem:[%s3 + $0x584] sm:$0xf]
    %v724 = vld [vmem:[%s3 + $0x588] sm:$0xf]
    %v725 = vld [vmem:[%s3 + $0x58c] sm:$0xf]
    %v726 = vld [vmem:[%s3 + $0x590] sm:$0xf]
    %v727 = vld [vmem:[%s3 + $0x594] sm:$0xf]
    %v728 = vld [vmem:[%s3 + $0x598] sm:$0xf]
    %v729 = vld [vmem:[%s3 + $0x59c] sm:$0xf]
    %v730 = vld [vmem:[%s3 + $0x5a0] sm:$0xf]
    %v731 = vld [vmem:[%s3 + $0x5a4] sm:$0xf]
    %v732 = vld [vmem:[%s3 + $0x5a8] sm:$0xf]
    %v733 = vld [vmem:[%s3 + $0x5ac] sm:$0xf]
    %v734 = vld [vmem:[%s3 + $0x5b0] sm:$0xf]
    %v735 = vld [vmem:[%s3 + $0x5b4] sm:$0xf]
    %v736 = vld [vmem:[%s3 + $0x5b8] sm:$0xf]
    %v737 = vld [vmem:[%s3 + $0x5bc] sm:$0xf]
    %v738 = vld [vmem:[%s3 + $0x5c0] sm:$0xf]
    %v739 = vld [vmem:[%s3 + $0x5c4] sm:$0xf]
    %v740 = vld [vmem:[%s3 + $0x5c8] sm:$0xf]
    %v741 = vld [vmem:[%s3 + $0x5cc] sm:$0xf]
    %v742 = vld [vmem:[%s3 + $0x5d0] sm:$0xf]
    %v743 = vld [vmem:[%s3 + $0x5d4] sm:$0xf]
    %v744 = vld [vmem:[%s3 + $0x5d8] sm:$0xf]
    %v745 = vld [vmem:[%s3 + $0x5dc] sm:$0xf]
    %v746 = vld [vmem:[%s3 + $0x5e0] sm:$0xf]
    %v747 = vld [vmem:[%s3 + $0x5e4] sm:$0xf]
    %v748 = vld [vmem:[%s3 + $0x5e8] sm:$0xf]
    %v749 = vld [vmem:[%s3 + $0x5ec] sm:$0xf]
    %v750 = vld [vmem:[%s3 + $0x5f0] sm:$0xf]
    %v751 = vld [vmem:[%s3 + $0x5f4] sm:$0xf]
    %v752 = vld [vmem:[%s3 + $0x5f8] sm:$0xf]
    %v753 = vld [vmem:[%s3 + $0x5fc] sm:$0xf]
    %v754 = vld [vmem:[%s4] sm:$0x1]
    %v756 = vlaneseq
    %v757 = vshrl.u32 %v756, 7
    %v758 = vsub.s32 0, %v757
    %v759 = vrot.slane %v754, %v758
    %v1145 = vunpack.c.l.b16 %v370
    %v1146 = vunpack.c.l.b16 %v371
    %v1147 = vunpack.c.l.b16 %v372
    %v1148 = vunpack.c.l.b16 %v373
    %v1149 = vunpack.c.l.b16 %v374
    %v1150 = vunpack.c.l.b16 %v375
    %v1151 = vunpack.c.l.b16 %v376
    %v1152 = vunpack.c.l.b16 %v377
    %v1153 = vunpack.c.l.b16 %v378
    %v1154 = vunpack.c.l.b16 %v379
    %v1155 = vunpack.c.l.b16 %v380
    %v1156 = vunpack.c.l.b16 %v381
    %v1157 = vunpack.c.l.b16 %v382
    %v1158 = vunpack.c.l.b16 %v383
    %v1159 = vunpack.c.l.b16 %v384
    %v1160 = vunpack.c.l.b16 %v385
    %v1161 = vunpack.c.l.b16 %v386
    %v1162 = vunpack.c.l.b16 %v387
    %v1163 = vunpack.c.l.b16 %v388
    %v1164 = vunpack.c.l.b16 %v389
    %v1165 = vunpack.c.l.b16 %v390
    %v1166 = vunpack.c.l.b16 %v391
    %v1167 = vunpack.c.l.b16 %v392
    %v1168 = vunpack.c.l.b16 %v393
    %v1169 = vunpack.c.l.b16 %v394
    %v1170 = vunpack.c.l.b16 %v395
    %v1171 = vunpack.c.l.b16 %v396
    %v1172 = vunpack.c.l.b16 %v397
    %v1173 = vunpack.c.l.b16 %v398
    %v1174 = vunpack.c.l.b16 %v399
    %v1175 = vunpack.c.l.b16 %v400
    %v1176 = vunpack.c.l.b16 %v401
    %v1177 = vunpack.c.l.b16 %v402
    %v1178 = vunpack.c.l.b16 %v403
    %v1179 = vunpack.c.l.b16 %v404
    %v1180 = vunpack.c.l.b16 %v405
    %v1181 = vunpack.c.l.b16 %v406
    %v1182 = vunpack.c.l.b16 %v407
    %v1183 = vunpack.c.l.b16 %v408
    %v1184 = vunpack.c.l.b16 %v409
    %v1185 = vunpack.c.l.b16 %v410
    %v1186 = vunpack.c.l.b16 %v411
    %v1187 = vunpack.c.l.b16 %v412
    %v1188 = vunpack.c.l.b16 %v413
    %v1189 = vunpack.c.l.b16 %v414
    %v1190 = vunpack.c.l.b16 %v415
    %v1191 = vunpack.c.l.b16 %v416
    %v1192 = vunpack.c.l.b16 %v417
    %v1193 = vunpack.c.l.b16 %v418
    %v1194 = vunpack.c.l.b16 %v419
    %v1195 = vunpack.c.l.b16 %v420
    %v1196 = vunpack.c.l.b16 %v421
    %v1197 = vunpack.c.l.b16 %v422
    %v1198 = vunpack.c.l.b16 %v423
    %v1199 = vunpack.c.l.b16 %v424
    %v1200 = vunpack.c.l.b16 %v425
    %v1201 = vunpack.c.l.b16 %v426
    %v1202 = vunpack.c.l.b16 %v427
    %v1203 = vunpack.c.l.b16 %v428
    %v1204 = vunpack.c.l.b16 %v429
    %v1205 = vunpack.c.l.b16 %v430
    %v1206 = vunpack.c.l.b16 %v431
    %v1207 = vunpack.c.l.b16 %v432
    %v1208 = vunpack.c.l.b16 %v433
    %v1209 = vunpack.c.l.b16 %v434
    %v1210 = vunpack.c.l.b16 %v435
    %v1211 = vunpack.c.l.b16 %v436
    %v1212 = vunpack.c.l.b16 %v437
    %v1213 = vunpack.c.l.b16 %v438
    %v1214 = vunpack.c.l.b16 %v439
    %v1215 = vunpack.c.l.b16 %v440
    %v1216 = vunpack.c.l.b16 %v441
    %v1217 = vunpack.c.l.b16 %v442
    %v1218 = vunpack.c.l.b16 %v443
    %v1219 = vunpack.c.l.b16 %v444
    %v1220 = vunpack.c.l.b16 %v445
    %v1221 = vunpack.c.l.b16 %v446
    %v1222 = vunpack.c.l.b16 %v447
    %v1223 = vunpack.c.l.b16 %v448
    %v1224 = vunpack.c.l.b16 %v449
    %v1225 = vunpack.c.l.b16 %v450
    %v1226 = vunpack.c.l.b16 %v451
    %v1227 = vunpack.c.l.b16 %v452
    %v1228 = vunpack.c.l.b16 %v453
    %v1229 = vunpack.c.l.b16 %v454
    %v1230 = vunpack.c.l.b16 %v455
    %v1231 = vunpack.c.l.b16 %v456
    %v1232 = vunpack.c.l.b16 %v457
    %v1233 = vunpack.c.l.b16 %v458
    %v1234 = vunpack.c.l.b16 %v459
    %v1235 = vunpack.c.l.b16 %v460
    %v1236 = vunpack.c.l.b16 %v461
    %v1237 = vunpack.c.l.b16 %v462
    %v1238 = vunpack.c.l.b16 %v463
    %v1239 = vunpack.c.l.b16 %v464
    %v1240 = vunpack.c.l.b16 %v465
    %v1241 = vunpack.c.l.b16 %v466
    %v1242 = vunpack.c.l.b16 %v467
    %v1243 = vunpack.c.l.b16 %v468
    %v1244 = vunpack.c.l.b16 %v469
    %v1245 = vunpack.c.l.b16 %v470
    %v1246 = vunpack.c.l.b16 %v471
    %v1247 = vunpack.c.l.b16 %v472
    %v1248 = vunpack.c.l.b16 %v473
    %v1249 = vunpack.c.l.b16 %v474
    %v1250 = vunpack.c.l.b16 %v475
    %v1251 = vunpack.c.l.b16 %v476
    %v1252 = vunpack.c.l.b16 %v477
    %v1253 = vunpack.c.l.b16 %v478
    %v1254 = vunpack.c.l.b16 %v479
    %v1255 = vunpack.c.l.b16 %v480
    %v1256 = vunpack.c.l.b16 %v481
    %v1257 = vunpack.c.l.b16 %v482
    %v1258 = vunpack.c.l.b16 %v483
    %v1259 = vunpack.c.l.b16 %v484
    %v1260 = vunpack.c.l.b16 %v485
    %v1261 = vunpack.c.l.b16 %v486
    %v1262 = vunpack.c.l.b16 %v487
    %v1263 = vunpack.c.l.b16 %v488
    %v1264 = vunpack.c.l.b16 %v489
    %v1265 = vunpack.c.l.b16 %v490
    %v1266 = vunpack.c.l.b16 %v491
    %v1267 = vunpack.c.l.b16 %v492
    %v1268 = vunpack.c.l.b16 %v493
    %v1269 = vunpack.c.l.b16 %v494
    %v1270 = vunpack.c.l.b16 %v495
    %v1271 = vunpack.c.l.b16 %v496
    %v1272 = vunpack.c.l.b16 %v497
    %v1273 = vunpack.c.l.b16 %v498
    %v1274 = vunpack.c.l.b16 %v499
    %v1275 = vunpack.c.l.b16 %v500
    %v1276 = vunpack.c.l.b16 %v501
    %v1277 = vunpack.c.l.b16 %v502
    %v1278 = vunpack.c.l.b16 %v503
    %v1279 = vunpack.c.l.b16 %v504
    %v1280 = vunpack.c.l.b16 %v505
    %v1281 = vunpack.c.l.b16 %v506
    %v1282 = vunpack.c.l.b16 %v507
    %v1283 = vunpack.c.l.b16 %v508
    %v1284 = vunpack.c.l.b16 %v509
    %v1285 = vunpack.c.l.b16 %v510
    %v1286 = vunpack.c.l.b16 %v511
    %v1287 = vunpack.c.l.b16 %v512
    %v1288 = vunpack.c.l.b16 %v513
    %v1289 = vunpack.c.l.b16 %v514
    %v1290 = vunpack.c.l.b16 %v515
    %v1291 = vunpack.c.l.b16 %v516
    %v1292 = vunpack.c.l.b16 %v517
    %v1293 = vunpack.c.l.b16 %v518
    %v1294 = vunpack.c.l.b16 %v519
    %v1295 = vunpack.c.l.b16 %v520
    %v1296 = vunpack.c.l.b16 %v521
    %v1297 = vunpack.c.l.b16 %v522
    %v1298 = vunpack.c.l.b16 %v523
    %v1299 = vunpack.c.l.b16 %v524
    %v1300 = vunpack.c.l.b16 %v525
    %v1301 = vunpack.c.l.b16 %v526
    %v1302 = vunpack.c.l.b16 %v527
    %v1303 = vunpack.c.l.b16 %v528
    %v1304 = vunpack.c.l.b16 %v529
    %v1305 = vunpack.c.l.b16 %v530
    %v1306 = vunpack.c.l.b16 %v531
    %v1307 = vunpack.c.l.b16 %v532
    %v1308 = vunpack.c.l.b16 %v533
    %v1309 = vunpack.c.l.b16 %v534
    %v1310 = vunpack.c.l.b16 %v535
    %v1311 = vunpack.c.l.b16 %v536
    %v1312 = vunpack.c.l.b16 %v537
    %v1313 = vunpack.c.l.b16 %v538
    %v1314 = vunpack.c.l.b16 %v539
    %v1315 = vunpack.c.l.b16 %v540
    %v1316 = vunpack.c.l.b16 %v541
    %v1317 = vunpack.c.l.b16 %v542
    %v1318 = vunpack.c.l.b16 %v543
    %v1319 = vunpack.c.l.b16 %v544
    %v1320 = vunpack.c.l.b16 %v545
    %v1321 = vunpack.c.l.b16 %v546
    %v1322 = vunpack.c.l.b16 %v547
    %v1323 = vunpack.c.l.b16 %v548
    %v1324 = vunpack.c.l.b16 %v549
    %v1325 = vunpack.c.l.b16 %v550
    %v1326 = vunpack.c.l.b16 %v551
    %v1327 = vunpack.c.l.b16 %v552
    %v1328 = vunpack.c.l.b16 %v553
    %v1329 = vunpack.c.l.b16 %v554
    %v1330 = vunpack.c.l.b16 %v555
    %v1331 = vunpack.c.l.b16 %v556
    %v1332 = vunpack.c.l.b16 %v557
    %v1333 = vunpack.c.l.b16 %v558
    %v1334 = vunpack.c.l.b16 %v559
    %v1335 = vunpack.c.l.b16 %v560
    %v1336 = vunpack.c.l.b16 %v561
    %v1337 = vunpack.c.l.b16 %v562
    %v1338 = vunpack.c.l.b16 %v563
    %v1339 = vunpack.c.l.b16 %v564
    %v1340 = vunpack.c.l.b16 %v565
    %v1341 = vunpack.c.l.b16 %v566
    %v1342 = vunpack.c.l.b16 %v567
    %v1343 = vunpack.c.l.b16 %v568
    %v1344 = vunpack.c.l.b16 %v569
    %v1345 = vunpack.c.l.b16 %v570
    %v1346 = vunpack.c.l.b16 %v571
    %v1347 = vunpack.c.l.b16 %v572
    %v1348 = vunpack.c.l.b16 %v573
    %v1349 = vunpack.c.l.b16 %v574
    %v1350 = vunpack.c.l.b16 %v575
    %v1351 = vunpack.c.l.b16 %v576
    %v1352 = vunpack.c.l.b16 %v577
    %v1353 = vunpack.c.l.b16 %v578
    %v1354 = vunpack.c.l.b16 %v579
    %v1355 = vunpack.c.l.b16 %v580
    %v1356 = vunpack.c.l.b16 %v581
    %v1357 = vunpack.c.l.b16 %v582
    %v1358 = vunpack.c.l.b16 %v583
    %v1359 = vunpack.c.l.b16 %v584
    %v1360 = vunpack.c.l.b16 %v585
    %v1361 = vunpack.c.l.b16 %v586
    %v1362 = vunpack.c.l.b16 %v587
    %v1363 = vunpack.c.l.b16 %v588
    %v1364 = vunpack.c.l.b16 %v589
    %v1365 = vunpack.c.l.b16 %v590
    %v1366 = vunpack.c.l.b16 %v591
    %v1367 = vunpack.c.l.b16 %v592
    %v1368 = vunpack.c.l.b16 %v593
    %v1369 = vunpack.c.l.b16 %v594
    %v1370 = vunpack.c.l.b16 %v595
    %v1371 = vunpack.c.l.b16 %v596
    %v1372 = vunpack.c.l.b16 %v597
    %v1373 = vunpack.c.l.b16 %v598
    %v1374 = vunpack.c.l.b16 %v599
    %v1375 = vunpack.c.l.b16 %v600
    %v1376 = vunpack.c.l.b16 %v601
    %v1377 = vunpack.c.l.b16 %v602
    %v1378 = vunpack.c.l.b16 %v603
    %v1379 = vunpack.c.l.b16 %v604
    %v1380 = vunpack.c.l.b16 %v605
    %v1381 = vunpack.c.l.b16 %v606
    %v1382 = vunpack.c.l.b16 %v607
    %v1383 = vunpack.c.l.b16 %v608
    %v1384 = vunpack.c.l.b16 %v609
    %v1385 = vunpack.c.l.b16 %v610
    %v1386 = vunpack.c.l.b16 %v611
    %v1387 = vunpack.c.l.b16 %v612
    %v1388 = vunpack.c.l.b16 %v613
    %v1389 = vunpack.c.l.b16 %v614
    %v1390 = vunpack.c.l.b16 %v615
    %v1391 = vunpack.c.l.b16 %v616
    %v1392 = vunpack.c.l.b16 %v617
    %v1393 = vunpack.c.l.b16 %v618
    %v1394 = vunpack.c.l.b16 %v619
    %v1395 = vunpack.c.l.b16 %v620
    %v1396 = vunpack.c.l.b16 %v621
    %v1397 = vunpack.c.l.b16 %v622
    %v1398 = vunpack.c.l.b16 %v623
    %v1399 = vunpack.c.l.b16 %v624
    %v1400 = vunpack.c.l.b16 %v625
    %v1401 = vunpack.c.l.b16 %v626
    %v1402 = vunpack.c.l.b16 %v627
    %v1403 = vunpack.c.l.b16 %v628
    %v1404 = vunpack.c.l.b16 %v629
    %v1405 = vunpack.c.l.b16 %v630
    %v1406 = vunpack.c.l.b16 %v631
    %v1407 = vunpack.c.l.b16 %v632
    %v1408 = vunpack.c.l.b16 %v633
    %v1409 = vunpack.c.l.b16 %v634
    %v1410 = vunpack.c.l.b16 %v635
    %v1411 = vunpack.c.l.b16 %v636
    %v1412 = vunpack.c.l.b16 %v637
    %v1413 = vunpack.c.l.b16 %v638
    %v1414 = vunpack.c.l.b16 %v639
    %v1415 = vunpack.c.l.b16 %v640
    %v1416 = vunpack.c.l.b16 %v641
    %v1417 = vunpack.c.l.b16 %v642
    %v1418 = vunpack.c.l.b16 %v643
    %v1419 = vunpack.c.l.b16 %v644
    %v1420 = vunpack.c.l.b16 %v645
    %v1421 = vunpack.c.l.b16 %v646
    %v1422 = vunpack.c.l.b16 %v647
    %v1423 = vunpack.c.l.b16 %v648
    %v1424 = vunpack.c.l.b16 %v649
    %v1425 = vunpack.c.l.b16 %v650
    %v1426 = vunpack.c.l.b16 %v651
    %v1427 = vunpack.c.l.b16 %v652
    %v1428 = vunpack.c.l.b16 %v653
    %v1429 = vunpack.c.l.b16 %v654
    %v1430 = vunpack.c.l.b16 %v655
    %v1431 = vunpack.c.l.b16 %v656
    %v1432 = vunpack.c.l.b16 %v657
    %v1433 = vunpack.c.l.b16 %v658
    %v1434 = vunpack.c.l.b16 %v659
    %v1435 = vunpack.c.l.b16 %v660
    %v1436 = vunpack.c.l.b16 %v661
    %v1437 = vunpack.c.l.b16 %v662
    %v1438 = vunpack.c.l.b16 %v663
    %v1439 = vunpack.c.l.b16 %v664
    %v1440 = vunpack.c.l.b16 %v665
    %v1441 = vunpack.c.l.b16 %v666
    %v1442 = vunpack.c.l.b16 %v667
    %v1443 = vunpack.c.l.b16 %v668
    %v1444 = vunpack.c.l.b16 %v669
    %v1445 = vunpack.c.l.b16 %v670
    %v1446 = vunpack.c.l.b16 %v671
    %v1447 = vunpack.c.l.b16 %v672
    %v1448 = vunpack.c.l.b16 %v673
    %v1449 = vunpack.c.l.b16 %v674
    %v1450 = vunpack.c.l.b16 %v675
    %v1451 = vunpack.c.l.b16 %v676
    %v1452 = vunpack.c.l.b16 %v677
    %v1453 = vunpack.c.l.b16 %v678
    %v1454 = vunpack.c.l.b16 %v679
    %v1455 = vunpack.c.l.b16 %v680
    %v1456 = vunpack.c.l.b16 %v681
    %v1457 = vunpack.c.l.b16 %v682
    %v1458 = vunpack.c.l.b16 %v683
    %v1459 = vunpack.c.l.b16 %v684
    %v1460 = vunpack.c.l.b16 %v685
    %v1461 = vunpack.c.l.b16 %v686
    %v1462 = vunpack.c.l.b16 %v687
    %v1463 = vunpack.c.l.b16 %v688
    %v1464 = vunpack.c.l.b16 %v689
    %v1465 = vunpack.c.l.b16 %v690
    %v1466 = vunpack.c.l.b16 %v691
    %v1467 = vunpack.c.l.b16 %v692
    %v1468 = vunpack.c.l.b16 %v693
    %v1469 = vunpack.c.l.b16 %v694
    %v1470 = vunpack.c.l.b16 %v695
    %v1471 = vunpack.c.l.b16 %v696
    %v1472 = vunpack.c.l.b16 %v697
    %v1473 = vunpack.c.l.b16 %v698
    %v1474 = vunpack.c.l.b16 %v699
    %v1475 = vunpack.c.l.b16 %v700
    %v1476 = vunpack.c.l.b16 %v701
    %v1477 = vunpack.c.l.b16 %v702
    %v1478 = vunpack.c.l.b16 %v703
    %v1479 = vunpack.c.l.b16 %v704
    %v1480 = vunpack.c.l.b16 %v705
    %v1481 = vunpack.c.l.b16 %v706
    %v1482 = vunpack.c.l.b16 %v707
    %v1483 = vunpack.c.l.b16 %v708
    %v1484 = vunpack.c.l.b16 %v709
    %v1485 = vunpack.c.l.b16 %v710
    %v1486 = vunpack.c.l.b16 %v711
    %v1487 = vunpack.c.l.b16 %v712
    %v1488 = vunpack.c.l.b16 %v713
    %v1489 = vunpack.c.l.b16 %v714
    %v1490 = vunpack.c.l.b16 %v715
    %v1491 = vunpack.c.l.b16 %v716
    %v1492 = vunpack.c.l.b16 %v717
    %v1493 = vunpack.c.l.b16 %v718
    %v1494 = vunpack.c.l.b16 %v719
    %v1495 = vunpack.c.l.b16 %v720
    %v1496 = vunpack.c.l.b16 %v721
    %v1497 = vunpack.c.l.b16 %v722
    %v1498 = vunpack.c.l.b16 %v723
    %v1499 = vunpack.c.l.b16 %v724
    %v1500 = vunpack.c.l.b16 %v725
    %v1501 = vunpack.c.l.b16 %v726
    %v1502 = vunpack.c.l.b16 %v727
    %v1503 = vunpack.c.l.b16 %v728
    %v1504 = vunpack.c.l.b16 %v729
    %v1505 = vunpack.c.l.b16 %v730
    %v1506 = vunpack.c.l.b16 %v731
    %v1507 = vunpack.c.l.b16 %v732
    %v1508 = vunpack.c.l.b16 %v733
    %v1509 = vunpack.c.l.b16 %v734
    %v1510 = vunpack.c.l.b16 %v735
    %v1511 = vunpack.c.l.b16 %v736
    %v1512 = vunpack.c.l.b16 %v737
    %v1513 = vunpack.c.l.b16 %v738
    %v1514 = vunpack.c.l.b16 %v739
    %v1515 = vunpack.c.l.b16 %v740
    %v1516 = vunpack.c.l.b16 %v741
    %v1517 = vunpack.c.l.b16 %v742
    %v1518 = vunpack.c.l.b16 %v743
    %v1519 = vunpack.c.l.b16 %v744
    %v1520 = vunpack.c.l.b16 %v745
    %v1521 = vunpack.c.l.b16 %v746
    %v1522 = vunpack.c.l.b16 %v747
    %v1523 = vunpack.c.l.b16 %v748
    %v1524 = vunpack.c.l.b16 %v749
    %v1525 = vunpack.c.l.b16 %v750
    %v1526 = vunpack.c.l.b16 %v751
    %v1527 = vunpack.c.l.b16 %v752
    %v1528 = vunpack.c.l.b16 %v753
    %v1529 = vpack.c.b16 %v1146, %v1145
    %v1530 = vpack.c.b16 %v1148, %v1147
    %v1531 = vpack.c.b16 %v1150, %v1149
    %v1532 = vpack.c.b16 %v1152, %v1151
    %v1533 = vpack.c.b16 %v1154, %v1153
    %v1534 = vpack.c.b16 %v1156, %v1155
    %v1535 = vpack.c.b16 %v1158, %v1157
    %v1536 = vpack.c.b16 %v1160, %v1159
    %v1537 = vpack.c.b16 %v1162, %v1161
    %v1538 = vpack.c.b16 %v1164, %v1163
    %v1539 = vpack.c.b16 %v1166, %v1165
    %v1540 = vpack.c.b16 %v1168, %v1167
    %v1541 = vpack.c.b16 %v1170, %v1169
    %v1542 = vpack.c.b16 %v1172, %v1171
    %v1543 = vpack.c.b16 %v1174, %v1173
    %v1544 = vpack.c.b16 %v1176, %v1175
    %v1545 = vpack.c.b16 %v1178, %v1177
    %v1546 = vpack.c.b16 %v1180, %v1179
    %v1547 = vpack.c.b16 %v1182, %v1181
    %v1548 = vpack.c.b16 %v1184, %v1183
    %v1549 = vpack.c.b16 %v1186, %v1185
    %v1550 = vpack.c.b16 %v1188, %v1187
    %v1551 = vpack.c.b16 %v1190, %v1189
    %v1552 = vpack.c.b16 %v1192, %v1191
    %v1553 = vpack.c.b16 %v1194, %v1193
    %v1554 = vpack.c.b16 %v1196, %v1195
    %v1555 = vpack.c.b16 %v1198, %v1197
    %v1556 = vpack.c.b16 %v1200, %v1199
    %v1557 = vpack.c.b16 %v1202, %v1201
    %v1558 = vpack.c.b16 %v1204, %v1203
    %v1559 = vpack.c.b16 %v1206, %v1205
    %v1560 = vpack.c.b16 %v1208, %v1207
    %v1561 = vpack.c.b16 %v1210, %v1209
    %v1562 = vpack.c.b16 %v1212, %v1211
    %v1563 = vpack.c.b16 %v1214, %v1213
    %v1564 = vpack.c.b16 %v1216, %v1215
    %v1565 = vpack.c.b16 %v1218, %v1217
    %v1566 = vpack.c.b16 %v1220, %v1219
    %v1567 = vpack.c.b16 %v1222, %v1221
    %v1568 = vpack.c.b16 %v1224, %v1223
    %v1569 = vpack.c.b16 %v1226, %v1225
    %v1570 = vpack.c.b16 %v1228, %v1227
    %v1571 = vpack.c.b16 %v1230, %v1229
    %v1572 = vpack.c.b16 %v1232, %v1231
    %v1573 = vpack.c.b16 %v1234, %v1233
    %v1574 = vpack.c.b16 %v1236, %v1235
    %v1575 = vpack.c.b16 %v1238, %v1237
    %v1576 = vpack.c.b16 %v1240, %v1239
    %v1577 = vpack.c.b16 %v1242, %v1241
    %v1578 = vpack.c.b16 %v1244, %v1243
    %v1579 = vpack.c.b16 %v1246, %v1245
    %v1580 = vpack.c.b16 %v1248, %v1247
    %v1581 = vpack.c.b16 %v1250, %v1249
    %v1582 = vpack.c.b16 %v1252, %v1251
    %v1583 = vpack.c.b16 %v1254, %v1253
    %v1584 = vpack.c.b16 %v1256, %v1255
    %v1585 = vpack.c.b16 %v1258, %v1257
    %v1586 = vpack.c.b16 %v1260, %v1259
    %v1587 = vpack.c.b16 %v1262, %v1261
    %v1588 = vpack.c.b16 %v1264, %v1263
    %v1589 = vpack.c.b16 %v1266, %v1265
    %v1590 = vpack.c.b16 %v1268, %v1267
    %v1591 = vpack.c.b16 %v1270, %v1269
    %v1592 = vpack.c.b16 %v1272, %v1271
    %v1593 = vpack.c.b16 %v1274, %v1273
    %v1594 = vpack.c.b16 %v1276, %v1275
    %v1595 = vpack.c.b16 %v1278, %v1277
    %v1596 = vpack.c.b16 %v1280, %v1279
    %v1597 = vpack.c.b16 %v1282, %v1281
    %v1598 = vpack.c.b16 %v1284, %v1283
    %v1599 = vpack.c.b16 %v1286, %v1285
    %v1600 = vpack.c.b16 %v1288, %v1287
    %v1601 = vpack.c.b16 %v1290, %v1289
    %v1602 = vpack.c.b16 %v1292, %v1291
    %v1603 = vpack.c.b16 %v1294, %v1293
    %v1604 = vpack.c.b16 %v1296, %v1295
    %v1605 = vpack.c.b16 %v1298, %v1297
    %v1606 = vpack.c.b16 %v1300, %v1299
    %v1607 = vpack.c.b16 %v1302, %v1301
    %v1608 = vpack.c.b16 %v1304, %v1303
    %v1609 = vpack.c.b16 %v1306, %v1305
    %v1610 = vpack.c.b16 %v1308, %v1307
    %v1611 = vpack.c.b16 %v1310, %v1309
    %v1612 = vpack.c.b16 %v1312, %v1311
    %v1613 = vpack.c.b16 %v1314, %v1313
    %v1614 = vpack.c.b16 %v1316, %v1315
    %v1615 = vpack.c.b16 %v1318, %v1317
    %v1616 = vpack.c.b16 %v1320, %v1319
    %v1617 = vpack.c.b16 %v1322, %v1321
    %v1618 = vpack.c.b16 %v1324, %v1323
    %v1619 = vpack.c.b16 %v1326, %v1325
    %v1620 = vpack.c.b16 %v1328, %v1327
    %v1621 = vpack.c.b16 %v1330, %v1329
    %v1622 = vpack.c.b16 %v1332, %v1331
    %v1623 = vpack.c.b16 %v1334, %v1333
    %v1624 = vpack.c.b16 %v1336, %v1335
    %v1625 = vpack.c.b16 %v1338, %v1337
    %v1626 = vpack.c.b16 %v1340, %v1339
    %v1627 = vpack.c.b16 %v1342, %v1341
    %v1628 = vpack.c.b16 %v1344, %v1343
    %v1629 = vpack.c.b16 %v1346, %v1345
    %v1630 = vpack.c.b16 %v1348, %v1347
    %v1631 = vpack.c.b16 %v1350, %v1349
    %v1632 = vpack.c.b16 %v1352, %v1351
    %v1633 = vpack.c.b16 %v1354, %v1353
    %v1634 = vpack.c.b16 %v1356, %v1355
    %v1635 = vpack.c.b16 %v1358, %v1357
    %v1636 = vpack.c.b16 %v1360, %v1359
    %v1637 = vpack.c.b16 %v1362, %v1361
    %v1638 = vpack.c.b16 %v1364, %v1363
    %v1639 = vpack.c.b16 %v1366, %v1365
    %v1640 = vpack.c.b16 %v1368, %v1367
    %v1641 = vpack.c.b16 %v1370, %v1369
    %v1642 = vpack.c.b16 %v1372, %v1371
    %v1643 = vpack.c.b16 %v1374, %v1373
    %v1644 = vpack.c.b16 %v1376, %v1375
    %v1645 = vpack.c.b16 %v1378, %v1377
    %v1646 = vpack.c.b16 %v1380, %v1379
    %v1647 = vpack.c.b16 %v1382, %v1381
    %v1648 = vpack.c.b16 %v1384, %v1383
    %v1649 = vpack.c.b16 %v1386, %v1385
    %v1650 = vpack.c.b16 %v1388, %v1387
    %v1651 = vpack.c.b16 %v1390, %v1389
    %v1652 = vpack.c.b16 %v1392, %v1391
    %v1653 = vpack.c.b16 %v1394, %v1393
    %v1654 = vpack.c.b16 %v1396, %v1395
    %v1655 = vpack.c.b16 %v1398, %v1397
    %v1656 = vpack.c.b16 %v1400, %v1399
    %v1657 = vpack.c.b16 %v1402, %v1401
    %v1658 = vpack.c.b16 %v1404, %v1403
    %v1659 = vpack.c.b16 %v1406, %v1405
    %v1660 = vpack.c.b16 %v1408, %v1407
    %v1661 = vpack.c.b16 %v1410, %v1409
    %v1662 = vpack.c.b16 %v1412, %v1411
    %v1663 = vpack.c.b16 %v1414, %v1413
    %v1664 = vpack.c.b16 %v1416, %v1415
    %v1665 = vpack.c.b16 %v1418, %v1417
    %v1666 = vpack.c.b16 %v1420, %v1419
    %v1667 = vpack.c.b16 %v1422, %v1421
    %v1668 = vpack.c.b16 %v1424, %v1423
    %v1669 = vpack.c.b16 %v1426, %v1425
    %v1670 = vpack.c.b16 %v1428, %v1427
    %v1671 = vpack.c.b16 %v1430, %v1429
    %v1672 = vpack.c.b16 %v1432, %v1431
    %v1673 = vpack.c.b16 %v1434, %v1433
    %v1674 = vpack.c.b16 %v1436, %v1435
    %v1675 = vpack.c.b16 %v1438, %v1437
    %v1676 = vpack.c.b16 %v1440, %v1439
    %v1677 = vpack.c.b16 %v1442, %v1441
    %v1678 = vpack.c.b16 %v1444, %v1443
    %v1679 = vpack.c.b16 %v1446, %v1445
    %v1680 = vpack.c.b16 %v1448, %v1447
    %v1681 = vpack.c.b16 %v1450, %v1449
    %v1682 = vpack.c.b16 %v1452, %v1451
    %v1683 = vpack.c.b16 %v1454, %v1453
    %v1684 = vpack.c.b16 %v1456, %v1455
    %v1685 = vpack.c.b16 %v1458, %v1457
    %v1686 = vpack.c.b16 %v1460, %v1459
    %v1687 = vpack.c.b16 %v1462, %v1461
    %v1688 = vpack.c.b16 %v1464, %v1463
    %v1689 = vpack.c.b16 %v1466, %v1465
    %v1690 = vpack.c.b16 %v1468, %v1467
    %v1691 = vpack.c.b16 %v1470, %v1469
    %v1692 = vpack.c.b16 %v1472, %v1471
    %v1693 = vpack.c.b16 %v1474, %v1473
    %v1694 = vpack.c.b16 %v1476, %v1475
    %v1695 = vpack.c.b16 %v1478, %v1477
    %v1696 = vpack.c.b16 %v1480, %v1479
    %v1697 = vpack.c.b16 %v1482, %v1481
    %v1698 = vpack.c.b16 %v1484, %v1483
    %v1699 = vpack.c.b16 %v1486, %v1485
    %v1700 = vpack.c.b16 %v1488, %v1487
    %v1701 = vpack.c.b16 %v1490, %v1489
    %v1702 = vpack.c.b16 %v1492, %v1491
    %v1703 = vpack.c.b16 %v1494, %v1493
    %v1704 = vpack.c.b16 %v1496, %v1495
    %v1705 = vpack.c.b16 %v1498, %v1497
    %v1706 = vpack.c.b16 %v1500, %v1499
    %v1707 = vpack.c.b16 %v1502, %v1501
    %v1708 = vpack.c.b16 %v1504, %v1503
    %v1709 = vpack.c.b16 %v1506, %v1505
    %v1710 = vpack.c.b16 %v1508, %v1507
    %v1711 = vpack.c.b16 %v1510, %v1509
    %v1712 = vpack.c.b16 %v1512, %v1511
    %v1713 = vpack.c.b16 %v1514, %v1513
    %v1714 = vpack.c.b16 %v1516, %v1515
    %v1715 = vpack.c.b16 %v1518, %v1517
    %v1716 = vpack.c.b16 %v1520, %v1519
    %v1717 = vpack.c.b16 %v1522, %v1521
    %v1718 = vpack.c.b16 %v1524, %v1523
    %v1719 = vpack.c.b16 %v1526, %v1525
    %v1720 = vpack.c.b16 %v1528, %v1527
    %1913 = vmatprep.subr.bf16.mxu0 0
    %1914 = vmatpush1.bf16.msra.mxu0 %v1529
    %1915 = vmatprep.subr.bf16.mxu0 0
    %1916 = vmatpush1.bf16.msra.mxu0 %v1530
    %1917 = vmatprep.subr.bf16.mxu0 0
    %1918 = vmatpush1.bf16.msra.mxu0 %v1531
    %1919 = vmatprep.subr.bf16.mxu0 0
    %1920 = vmatpush1.bf16.msra.mxu0 %v1532
    %1921 = vmatprep.subr.bf16.mxu0 0
    %1922 = vmatpush1.bf16.msra.mxu0 %v1533
    %1923 = vmatprep.subr.bf16.mxu0 0
    %1924 = vmatpush1.bf16.msra.mxu0 %v1534
    %1925 = vmatprep.subr.bf16.mxu0 0
    %1926 = vmatpush1.bf16.msra.mxu0 %v1535
    %1927 = vmatprep.subr.bf16.mxu0 0
    %1928 = vmatpush1.bf16.msra.mxu0 %v1536
    %1929 = vmatprep.subr.bf16.mxu0 0
    %1930 = vmatpush1.bf16.msra.mxu0 %v1537
    %1931 = vmatprep.subr.bf16.mxu0 0
    %1932 = vmatpush1.bf16.msra.mxu0 %v1538
    %1933 = vmatprep.subr.bf16.mxu0 0
    %1934 = vmatpush1.bf16.msra.mxu0 %v1539
    %1935 = vmatprep.subr.bf16.mxu0 0
    %1936 = vmatpush1.bf16.msra.mxu0 %v1540
    %1937 = vmatprep.subr.bf16.mxu0 0
    %1938 = vmatpush1.bf16.msra.mxu0 %v1541
    %1939 = vmatprep.subr.bf16.mxu0 0
    %1940 = vmatpush1.bf16.msra.mxu0 %v1542
    %1941 = vmatprep.subr.bf16.mxu0 0
    %1942 = vmatpush1.bf16.msra.mxu0 %v1543
    %1943 = vmatprep.subr.bf16.mxu0 0
    %1944 = vmatpush1.bf16.msra.mxu0 %v1544
    %1945 = vmatprep.mubr.bf16.mxu0 %v347
    %1946 = vmatmul.mubr.bf16.gmra.mrb[0].mxu0 %v346
    %v1947 = vpop.f32.mrb[0].mxu0
    %v1948 = vadd.f32 %v759, %v1947
    %v1949 = vpop.f32.mrb[0].mxu0
    %v1950 = vpop.f32.mrb[0].mxu0
    %v1951 = vpop.f32.mrb[0].mxu0
    %1952 = vdwg.mxu0
    %1953 = vmatprep.subr.bf16.mxu0 0
    %1954 = vmatpush1.bf16.msra.mxu0 %v1545
    %1955 = vmatprep.subr.bf16.mxu0 0
    %1956 = vmatpush1.bf16.msra.mxu0 %v1546
    %1957 = vmatprep.subr.bf16.mxu0 0
    %1958 = vmatpush1.bf16.msra.mxu0 %v1547
    %1959 = vmatprep.subr.bf16.mxu0 0
    %1960 = vmatpush1.bf16.msra.mxu0 %v1548
    %1961 = vmatprep.subr.bf16.mxu0 0
    %1962 = vmatpush1.bf16.msra.mxu0 %v1549
    %1963 = vmatprep.subr.bf16.mxu0 0
    %1964 = vmatpush1.bf16.msra.mxu0 %v1550
    %1965 = vmatprep.subr.bf16.mxu0 0
    %1966 = vmatpush1.bf16.msra.mxu0 %v1551
    %1967 = vmatprep.subr.bf16.mxu0 0
    %1968 = vmatpush1.bf16.msra.mxu0 %v1552
    %1969 = vmatprep.subr.bf16.mxu0 0
    %1970 = vmatpush1.bf16.msra.mxu0 %v1553
    %1971 = vmatprep.subr.bf16.mxu0 0
    %1972 = vmatpush1.bf16.msra.mxu0 %v1554
    %1973 = vmatprep.subr.bf16.mxu0 0
    %1974 = vmatpush1.bf16.msra.mxu0 %v1555
    %1975 = vmatprep.subr.bf16.mxu0 0
    %1976 = vmatpush1.bf16.msra.mxu0 %v1556
    %1977 = vmatprep.subr.bf16.mxu0 0
    %1978 = vmatpush1.bf16.msra.mxu0 %v1557
    %1979 = vmatprep.subr.bf16.mxu0 0
    %1980 = vmatpush1.bf16.msra.mxu0 %v1558
    %1981 = vmatprep.subr.bf16.mxu0 0
    %1982 = vmatpush1.bf16.msra.mxu0 %v1559
    %1983 = vmatprep.subr.bf16.mxu0 0
    %1984 = vmatpush1.bf16.msra.mxu0 %v1560
    %1985 = vmatprep.mubr.bf16.mxu0 %v349
    %1986 = vmatmul.mubr.bf16.gmra.mrb[0].mxu0 %v348
    %v1987 = vpop.f32.mrb[0].mxu0
    %v1988 = vadd.f32 %v1948, %v1987
    %v1989 = vpop.f32.mrb[0].mxu0
    %v1990 = vpop.f32.mrb[0].mxu0
    %v1991 = vpop.f32.mrb[0].mxu0
    %1992 = vdwg.mxu0
    %1993 = vmatprep.subr.bf16.mxu0 0
    %1994 = vmatpush1.bf16.msra.mxu0 %v1561
    %1995 = vmatprep.subr.bf16.mxu0 0
    %1996 = vmatpush1.bf16.msra.mxu0 %v1562
    %1997 = vmatprep.subr.bf16.mxu0 0
    %1998 = vmatpush1.bf16.msra.mxu0 %v1563
    %1999 = vmatprep.subr.bf16.mxu0 0
    %2000 = vmatpush1.bf16.msra.mxu0 %v1564
    %2001 = vmatprep.subr.bf16.mxu0 0
    %2002 = vmatpush1.bf16.msra.mxu0 %v1565
    %2003 = vmatprep.subr.bf16.mxu0 0
    %2004 = vmatpush1.bf16.msra.mxu0 %v1566
    %2005 = vmatprep.subr.bf16.mxu0 0
    %2006 = vmatpush1.bf16.msra.mxu0 %v1567
    %2007 = vmatprep.subr.bf16.mxu0 0
    %2008 = vmatpush1.bf16.msra.mxu0 %v1568
    %2009 = vmatprep.subr.bf16.mxu0 0
    %2010 = vmatpush1.bf16.msra.mxu0 %v1569
    %2011 = vmatprep.subr.bf16.mxu0 0
    %2012 = vmatpush1.bf16.msra.mxu0 %v1570
    %2013 = vmatprep.subr.bf16.mxu0 0
    %2014 = vmatpush1.bf16.msra.mxu0 %v1571
    %2015 = vmatprep.subr.bf16.mxu0 0
    %2016 = vmatpush1.bf16.msra.mxu0 %v1572
    %2017 = vmatprep.subr.bf16.mxu0 0
    %2018 = vmatpush1.bf16.msra.mxu0 %v1573
    %2019 = vmatprep.subr.bf16.mxu0 0
    %2020 = vmatpush1.bf16.msra.mxu0 %v1574
    %2021 = vmatprep.subr.bf16.mxu0 0
    %2022 = vmatpush1.bf16.msra.mxu0 %v1575
    %2023 = vmatprep.subr.bf16.mxu0 0
    %2024 = vmatpush1.bf16.msra.mxu0 %v1576
    %2025 = vmatprep.mubr.bf16.mxu0 %v351
    %2026 = vmatmul.mubr.bf16.gmra.mrb[0].mxu0 %v350
    %v2027 = vpop.f32.mrb[0].mxu0
    %v2028 = vadd.f32 %v1988, %v2027
    %v2029 = vpop.f32.mrb[0].mxu0
    %v2030 = vpop.f32.mrb[0].mxu0
    %v2031 = vpop.f32.mrb[0].mxu0
    %2032 = vdwg.mxu0
    %2033 = vmatprep.subr.bf16.mxu0 0
    %2034 = vmatpush1.bf16.msra.mxu0 %v1577
    %2035 = vmatprep.subr.bf16.mxu0 0
    %2036 = vmatpush1.bf16.msra.mxu0 %v1578
    %2037 = vmatprep.subr.bf16.mxu0 0
    %2038 = vmatpush1.bf16.msra.mxu0 %v1579
    %2039 = vmatprep.subr.bf16.mxu0 0
    %2040 = vmatpush1.bf16.msra.mxu0 %v1580
    %2041 = vmatprep.subr.bf16.mxu0 0
    %2042 = vmatpush1.bf16.msra.mxu0 %v1581
    %2043 = vmatprep.subr.bf16.mxu0 0
    %2044 = vmatpush1.bf16.msra.mxu0 %v1582
    %2045 = vmatprep.subr.bf16.mxu0 0
    %2046 = vmatpush1.bf16.msra.mxu0 %v1583
    %2047 = vmatprep.subr.bf16.mxu0 0
    %2048 = vmatpush1.bf16.msra.mxu0 %v1584
    %2049 = vmatprep.subr.bf16.mxu0 0
    %2050 = vmatpush1.bf16.msra.mxu0 %v1585
    %2051 = vmatprep.subr.bf16.mxu0 0
    %2052 = vmatpush1.bf16.msra.mxu0 %v1586
    %2053 = vmatprep.subr.bf16.mxu0 0
    %2054 = vmatpush1.bf16.msra.mxu0 %v1587
    %2055 = vmatprep.subr.bf16.mxu0 0
    %2056 = vmatpush1.bf16.msra.mxu0 %v1588
    %2057 = vmatprep.subr.bf16.mxu0 0
    %2058 = vmatpush1.bf16.msra.mxu0 %v1589
    %2059 = vmatprep.subr.bf16.mxu0 0
    %2060 = vmatpush1.bf16.msra.mxu0 %v1590
    %2061 = vmatprep.subr.bf16.mxu0 0
    %2062 = vmatpush1.bf16.msra.mxu0 %v1591
    %2063 = vmatprep.subr.bf16.mxu0 0
    %2064 = vmatpush1.bf16.msra.mxu0 %v1592
    %2065 = vmatprep.mubr.bf16.mxu0 %v353
    %2066 = vmatmul.mubr.bf16.gmra.mrb[0].mxu0 %v352
    %v2067 = vpop.f32.mrb[0].mxu0
    %v2068 = vadd.f32 %v2028, %v2067
    %v2069 = vpop.f32.mrb[0].mxu0
    %v2070 = vpop.f32.mrb[0].mxu0
    %v2071 = vpop.f32.mrb[0].mxu0
    %2072 = vdwg.mxu0
    %2073 = vmatprep.subr.bf16.mxu0 0
    %2074 = vmatpush1.bf16.msra.mxu0 %v1593
    %2075 = vmatprep.subr.bf16.mxu0 0
    %2076 = vmatpush1.bf16.msra.mxu0 %v1594
    %2077 = vmatprep.subr.bf16.mxu0 0
    %2078 = vmatpush1.bf16.msra.mxu0 %v1595
    %2079 = vmatprep.subr.bf16.mxu0 0
    %2080 = vmatpush1.bf16.msra.mxu0 %v1596
    %2081 = vmatprep.subr.bf16.mxu0 0
    %2082 = vmatpush1.bf16.msra.mxu0 %v1597
    %2083 = vmatprep.subr.bf16.mxu0 0
    %2084 = vmatpush1.bf16.msra.mxu0 %v1598
    %2085 = vmatprep.subr.bf16.mxu0 0
    %2086 = vmatpush1.bf16.msra.mxu0 %v1599
    %2087 = vmatprep.subr.bf16.mxu0 0
    %2088 = vmatpush1.bf16.msra.mxu0 %v1600
    %2089 = vmatprep.subr.bf16.mxu0 0
    %2090 = vmatpush1.bf16.msra.mxu0 %v1601
    %2091 = vmatprep.subr.bf16.mxu0 0
    %2092 = vmatpush1.bf16.msra.mxu0 %v1602
    %2093 = vmatprep.subr.bf16.mxu0 0
    %2094 = vmatpush1.bf16.msra.mxu0 %v1603
    %2095 = vmatprep.subr.bf16.mxu0 0
    %2096 = vmatpush1.bf16.msra.mxu0 %v1604
    %2097 = vmatprep.subr.bf16.mxu0 0
    %2098 = vmatpush1.bf16.msra.mxu0 %v1605
    %2099 = vmatprep.subr.bf16.mxu0 0
    %2100 = vmatpush1.bf16.msra.mxu0 %v1606
    %2101 = vmatprep.subr.bf16.mxu0 0
    %2102 = vmatpush1.bf16.msra.mxu0 %v1607
    %2103 = vmatprep.subr.bf16.mxu0 0
    %2104 = vmatpush1.bf16.msra.mxu0 %v1608
    %2105 = vmatprep.mubr.bf16.mxu0 %v355
    %2106 = vmatmul.mubr.bf16.gmra.mrb[0].mxu0 %v354
    %v2107 = vpop.f32.mrb[0].mxu0
    %v2108 = vadd.f32 %v2068, %v2107
    %v2109 = vpop.f32.mrb[0].mxu0
    %v2110 = vpop.f32.mrb[0].mxu0
    %v2111 = vpop.f32.mrb[0].mxu0
    %2112 = vdwg.mxu0
    %2113 = vmatprep.subr.bf16.mxu0 0
    %2114 = vmatpush1.bf16.msra.mxu0 %v1609
    %2115 = vmatprep.subr.bf16.mxu0 0
    %2116 = vmatpush1.bf16.msra.mxu0 %v1610
    %2117 = vmatprep.subr.bf16.mxu0 0
    %2118 = vmatpush1.bf16.msra.mxu0 %v1611
    %2119 = vmatprep.subr.bf16.mxu0 0
    %2120 = vmatpush1.bf16.msra.mxu0 %v1612
    %2121 = vmatprep.subr.bf16.mxu0 0
    %2122 = vmatpush1.bf16.msra.mxu0 %v1613
    %2123 = vmatprep.subr.bf16.mxu0 0
    %2124 = vmatpush1.bf16.msra.mxu0 %v1614
    %2125 = vmatprep.subr.bf16.mxu0 0
    %2126 = vmatpush1.bf16.msra.mxu0 %v1615
    %2127 = vmatprep.subr.bf16.mxu0 0
    %2128 = vmatpush1.bf16.msra.mxu0 %v1616
    %2129 = vmatprep.subr.bf16.mxu0 0
    %2130 = vmatpush1.bf16.msra.mxu0 %v1617
    %2131 = vmatprep.subr.bf16.mxu0 0
    %2132 = vmatpush1.bf16.msra.mxu0 %v1618
    %2133 = vmatprep.subr.bf16.mxu0 0
    %2134 = vmatpush1.bf16.msra.mxu0 %v1619
    %2135 = vmatprep.subr.bf16.mxu0 0
    %2136 = vmatpush1.bf16.msra.mxu0 %v1620
    %2137 = vmatprep.subr.bf16.mxu0 0
    %2138 = vmatpush1.bf16.msra.mxu0 %v1621
    %2139 = vmatprep.subr.bf16.mxu0 0
    %2140 = vmatpush1.bf16.msra.mxu0 %v1622
    %2141 = vmatprep.subr.bf16.mxu0 0
    %2142 = vmatpush1.bf16.msra.mxu0 %v1623
    %2143 = vmatprep.subr.bf16.mxu0 0
    %2144 = vmatpush1.bf16.msra.mxu0 %v1624
    %2145 = vmatprep.mubr.bf16.mxu0 %v357
    %2146 = vmatmul.mubr.bf16.gmra.mrb[0].mxu0 %v356
    %v2147 = vpop.f32.mrb[0].mxu0
    %v2148 = vadd.f32 %v2108, %v2147
    %v2149 = vpop.f32.mrb[0].mxu0
    %v2150 = vpop.f32.mrb[0].mxu0
    %v2151 = vpop.f32.mrb[0].mxu0
    %2152 = vdwg.mxu0
    %2153 = vmatprep.subr.bf16.mxu0 0
    %2154 = vmatpush1.bf16.msra.mxu0 %v1625
    %2155 = vmatprep.subr.bf16.mxu0 0
    %2156 = vmatpush1.bf16.msra.mxu0 %v1626
    %2157 = vmatprep.subr.bf16.mxu0 0
    %2158 = vmatpush1.bf16.msra.mxu0 %v1627
    %2159 = vmatprep.subr.bf16.mxu0 0
    %2160 = vmatpush1.bf16.msra.mxu0 %v1628
    %2161 = vmatprep.subr.bf16.mxu0 0
    %2162 = vmatpush1.bf16.msra.mxu0 %v1629
    %2163 = vmatprep.subr.bf16.mxu0 0
    %2164 = vmatpush1.bf16.msra.mxu0 %v1630
    %2165 = vmatprep.subr.bf16.mxu0 0
    %2166 = vmatpush1.bf16.msra.mxu0 %v1631
    %2167 = vmatprep.subr.bf16.mxu0 0
    %2168 = vmatpush1.bf16.msra.mxu0 %v1632
    %2169 = vmatprep.subr.bf16.mxu0 0
    %2170 = vmatpush1.bf16.msra.mxu0 %v1633
    %2171 = vmatprep.subr.bf16.mxu0 0
    %2172 = vmatpush1.bf16.msra.mxu0 %v1634
    %2173 = vmatprep.subr.bf16.mxu0 0
    %2174 = vmatpush1.bf16.msra.mxu0 %v1635
    %2175 = vmatprep.subr.bf16.mxu0 0
    %2176 = vmatpush1.bf16.msra.mxu0 %v1636
    %2177 = vmatprep.subr.bf16.mxu0 0
    %2178 = vmatpush1.bf16.msra.mxu0 %v1637
    %2179 = vmatprep.subr.bf16.mxu0 0
    %2180 = vmatpush1.bf16.msra.mxu0 %v1638
    %2181 = vmatprep.subr.bf16.mxu0 0
    %2182 = vmatpush1.bf16.msra.mxu0 %v1639
    %2183 = vmatprep.subr.bf16.mxu0 0
    %2184 = vmatpush1.bf16.msra.mxu0 %v1640
    %2185 = vmatprep.mubr.bf16.mxu0 %v359
    %2186 = vmatmul.mubr.bf16.gmra.mrb[0].mxu0 %v358
    %v2187 = vpop.f32.mrb[0].mxu0
    %v2188 = vadd.f32 %v2148, %v2187
    %v2189 = vpop.f32.mrb[0].mxu0
    %v2190 = vpop.f32.mrb[0].mxu0
    %v2191 = vpop.f32.mrb[0].mxu0
    %2192 = vdwg.mxu0
    %2193 = vmatprep.subr.bf16.mxu0 0
    %2194 = vmatpush1.bf16.msra.mxu0 %v1641
    %2195 = vmatprep.subr.bf16.mxu0 0
    %2196 = vmatpush1.bf16.msra.mxu0 %v1642
    %2197 = vmatprep.subr.bf16.mxu0 0
    %2198 = vmatpush1.bf16.msra.mxu0 %v1643
    %2199 = vmatprep.subr.bf16.mxu0 0
    %2200 = vmatpush1.bf16.msra.mxu0 %v1644
    %2201 = vmatprep.subr.bf16.mxu0 0
    %2202 = vmatpush1.bf16.msra.mxu0 %v1645
    %2203 = vmatprep.subr.bf16.mxu0 0
    %2204 = vmatpush1.bf16.msra.mxu0 %v1646
    %2205 = vmatprep.subr.bf16.mxu0 0
    %2206 = vmatpush1.bf16.msra.mxu0 %v1647
    %2207 = vmatprep.subr.bf16.mxu0 0
    %2208 = vmatpush1.bf16.msra.mxu0 %v1648
    %2209 = vmatprep.subr.bf16.mxu0 0
    %2210 = vmatpush1.bf16.msra.mxu0 %v1649
    %2211 = vmatprep.subr.bf16.mxu0 0
    %2212 = vmatpush1.bf16.msra.mxu0 %v1650
    %2213 = vmatprep.subr.bf16.mxu0 0
    %2214 = vmatpush1.bf16.msra.mxu0 %v1651
    %2215 = vmatprep.subr.bf16.mxu0 0
    %2216 = vmatpush1.bf16.msra.mxu0 %v1652
    %2217 = vmatprep.subr.bf16.mxu0 0
    %2218 = vmatpush1.bf16.msra.mxu0 %v1653
    %2219 = vmatprep.subr.bf16.mxu0 0
    %2220 = vmatpush1.bf16.msra.mxu0 %v1654
    %2221 = vmatprep.subr.bf16.mxu0 0
    %2222 = vmatpush1.bf16.msra.mxu0 %v1655
    %2223 = vmatprep.subr.bf16.mxu0 0
    %2224 = vmatpush1.bf16.msra.mxu0 %v1656
    %2225 = vmatprep.mubr.bf16.mxu0 %v361
    %2226 = vmatmul.mubr.bf16.gmra.mrb[0].mxu0 %v360
    %v2227 = vpop.f32.mrb[0].mxu0
    %v2228 = vadd.f32 %v2188, %v2227
    %v2229 = vpop.f32.mrb[0].mxu0
    %v2230 = vpop.f32.mrb[0].mxu0
    %v2231 = vpop.f32.mrb[0].mxu0
    %2232 = vdwg.mxu0
    %2233 = vmatprep.subr.bf16.mxu0 0
    %2234 = vmatpush1.bf16.msra.mxu0 %v1657
    %2235 = vmatprep.subr.bf16.mxu0 0
    %2236 = vmatpush1.bf16.msra.mxu0 %v1658
    %2237 = vmatprep.subr.bf16.mxu0 0
    %2238 = vmatpush1.bf16.msra.mxu0 %v1659
    %2239 = vmatprep.subr.bf16.mxu0 0
    %2240 = vmatpush1.bf16.msra.mxu0 %v1660
    %2241 = vmatprep.subr.bf16.mxu0 0
    %2242 = vmatpush1.bf16.msra.mxu0 %v1661
    %2243 = vmatprep.subr.bf16.mxu0 0
    %2244 = vmatpush1.bf16.msra.mxu0 %v1662
    %2245 = vmatprep.subr.bf16.mxu0 0
    %2246 = vmatpush1.bf16.msra.mxu0 %v1663
    %2247 = vmatprep.subr.bf16.mxu0 0
    %2248 = vmatpush1.bf16.msra.mxu0 %v1664
    %2249 = vmatprep.subr.bf16.mxu0 0
    %2250 = vmatpush1.bf16.msra.mxu0 %v1665
    %2251 = vmatprep.subr.bf16.mxu0 0
    %2252 = vmatpush1.bf16.msra.mxu0 %v1666
    %2253 = vmatprep.subr.bf16.mxu0 0
    %2254 = vmatpush1.bf16.msra.mxu0 %v1667
    %2255 = vmatprep.subr.bf16.mxu0 0
    %2256 = vmatpush1.bf16.msra.mxu0 %v1668
    %2257 = vmatprep.subr.bf16.mxu0 0
    %2258 = vmatpush1.bf16.msra.mxu0 %v1669
    %2259 = vmatprep.subr.bf16.mxu0 0
    %2260 = vmatpush1.bf16.msra.mxu0 %v1670
    %2261 = vmatprep.subr.bf16.mxu0 0
    %2262 = vmatpush1.bf16.msra.mxu0 %v1671
    %2263 = vmatprep.subr.bf16.mxu0 0
    %2264 = vmatpush1.bf16.msra.mxu0 %v1672
    %2265 = vmatprep.mubr.bf16.mxu0 %v363
    %2266 = vmatmul.mubr.bf16.gmra.mrb[0].mxu0 %v362
    %v2267 = vpop.f32.mrb[0].mxu0
    %v2268 = vadd.f32 %v2228, %v2267
    %v2269 = vpop.f32.mrb[0].mxu0
    %v2270 = vpop.f32.mrb[0].mxu0
    %v2271 = vpop.f32.mrb[0].mxu0
    %2272 = vdwg.mxu0
    %2273 = vmatprep.subr.bf16.mxu0 0
    %2274 = vmatpush1.bf16.msra.mxu0 %v1673
    %2275 = vmatprep.subr.bf16.mxu0 0
    %2276 = vmatpush1.bf16.msra.mxu0 %v1674
    %2277 = vmatprep.subr.bf16.mxu0 0
    %2278 = vmatpush1.bf16.msra.mxu0 %v1675
    %2279 = vmatprep.subr.bf16.mxu0 0
    %2280 = vmatpush1.bf16.msra.mxu0 %v1676
    %2281 = vmatprep.subr.bf16.mxu0 0
    %2282 = vmatpush1.bf16.msra.mxu0 %v1677
    %2283 = vmatprep.subr.bf16.mxu0 0
    %2284 = vmatpush1.bf16.msra.mxu0 %v1678
    %2285 = vmatprep.subr.bf16.mxu0 0
    %2286 = vmatpush1.bf16.msra.mxu0 %v1679
    %2287 = vmatprep.subr.bf16.mxu0 0
    %2288 = vmatpush1.bf16.msra.mxu0 %v1680
    %2289 = vmatprep.subr.bf16.mxu0 0
    %2290 = vmatpush1.bf16.msra.mxu0 %v1681
    %2291 = vmatprep.subr.bf16.mxu0 0
    %2292 = vmatpush1.bf16.msra.mxu0 %v1682
    %2293 = vmatprep.subr.bf16.mxu0 0
    %2294 = vmatpush1.bf16.msra.mxu0 %v1683
    %2295 = vmatprep.subr.bf16.mxu0 0
    %2296 = vmatpush1.bf16.msra.mxu0 %v1684
    %2297 = vmatprep.subr.bf16.mxu0 0
    %2298 = vmatpush1.bf16.msra.mxu0 %v1685
    %2299 = vmatprep.subr.bf16.mxu0 0
    %2300 = vmatpush1.bf16.msra.mxu0 %v1686
    %2301 = vmatprep.subr.bf16.mxu0 0
    %2302 = vmatpush1.bf16.msra.mxu0 %v1687
    %2303 = vmatprep.subr.bf16.mxu0 0
    %2304 = vmatpush1.bf16.msra.mxu0 %v1688
    %2305 = vmatprep.mubr.bf16.mxu0 %v365
    %2306 = vmatmul.mubr.bf16.gmra.mrb[0].mxu0 %v364
    %v2307 = vpop.f32.mrb[0].mxu0
    %v2308 = vadd.f32 %v2268, %v2307
    %v2309 = vpop.f32.mrb[0].mxu0
    %v2310 = vpop.f32.mrb[0].mxu0
    %v2311 = vpop.f32.mrb[0].mxu0
    %2312 = vdwg.mxu0
    %2313 = vmatprep.subr.bf16.mxu0 0
    %2314 = vmatpush1.bf16.msra.mxu0 %v1689
    %2315 = vmatprep.subr.bf16.mxu0 0
    %2316 = vmatpush1.bf16.msra.mxu0 %v1690
    %2317 = vmatprep.subr.bf16.mxu0 0
    %2318 = vmatpush1.bf16.msra.mxu0 %v1691
    %2319 = vmatprep.subr.bf16.mxu0 0
    %2320 = vmatpush1.bf16.msra.mxu0 %v1692
    %2321 = vmatprep.subr.bf16.mxu0 0
    %2322 = vmatpush1.bf16.msra.mxu0 %v1693
    %2323 = vmatprep.subr.bf16.mxu0 0
    %2324 = vmatpush1.bf16.msra.mxu0 %v1694
    %2325 = vmatprep.subr.bf16.mxu0 0
    %2326 = vmatpush1.bf16.msra.mxu0 %v1695
    %2327 = vmatprep.subr.bf16.mxu0 0
    %2328 = vmatpush1.bf16.msra.mxu0 %v1696
    %2329 = vmatprep.subr.bf16.mxu0 0
    %2330 = vmatpush1.bf16.msra.mxu0 %v1697
    %2331 = vmatprep.subr.bf16.mxu0 0
    %2332 = vmatpush1.bf16.msra.mxu0 %v1698
    %2333 = vmatprep.subr.bf16.mxu0 0
    %2334 = vmatpush1.bf16.msra.mxu0 %v1699
    %2335 = vmatprep.subr.bf16.mxu0 0
    %2336 = vmatpush1.bf16.msra.mxu0 %v1700
    %2337 = vmatprep.subr.bf16.mxu0 0
    %2338 = vmatpush1.bf16.msra.mxu0 %v1701
    %2339 = vmatprep.subr.bf16.mxu0 0
    %2340 = vmatpush1.bf16.msra.mxu0 %v1702
    %2341 = vmatprep.subr.bf16.mxu0 0
    %2342 = vmatpush1.bf16.msra.mxu0 %v1703
    %2343 = vmatprep.subr.bf16.mxu0 0
    %2344 = vmatpush1.bf16.msra.mxu0 %v1704
    %2345 = vmatprep.mubr.bf16.mxu0 %v367
    %2346 = vmatmul.mubr.bf16.gmra.mrb[0].mxu0 %v366
    %v2347 = vpop.f32.mrb[0].mxu0
    %v2348 = vadd.f32 %v2308, %v2347
    %v2349 = vpop.f32.mrb[0].mxu0
    %v2350 = vpop.f32.mrb[0].mxu0
    %v2351 = vpop.f32.mrb[0].mxu0
    %2352 = vdwg.mxu0
    %2353 = vmatprep.subr.bf16.mxu0 0
    %2354 = vmatpush1.bf16.msra.mxu0 %v1705
    %2355 = vmatprep.subr.bf16.mxu0 0
    %2356 = vmatpush1.bf16.msra.mxu0 %v1706
    %2357 = vmatprep.subr.bf16.mxu0 0
    %2358 = vmatpush1.bf16.msra.mxu0 %v1707
    %2359 = vmatprep.subr.bf16.mxu0 0
    %2360 = vmatpush1.bf16.msra.mxu0 %v1708
    %2361 = vmatprep.subr.bf16.mxu0 0
    %2362 = vmatpush1.bf16.msra.mxu0 %v1709
    %2363 = vmatprep.subr.bf16.mxu0 0
    %2364 = vmatpush1.bf16.msra.mxu0 %v1710
    %2365 = vmatprep.subr.bf16.mxu0 0
    %2366 = vmatpush1.bf16.msra.mxu0 %v1711
    %2367 = vmatprep.subr.bf16.mxu0 0
    %2368 = vmatpush1.bf16.msra.mxu0 %v1712
    %2369 = vmatprep.subr.bf16.mxu0 0
    %2370 = vmatpush1.bf16.msra.mxu0 %v1713
    %2371 = vmatprep.subr.bf16.mxu0 0
    %2372 = vmatpush1.bf16.msra.mxu0 %v1714
    %2373 = vmatprep.subr.bf16.mxu0 0
    %2374 = vmatpush1.bf16.msra.mxu0 %v1715
    %2375 = vmatprep.subr.bf16.mxu0 0
    %2376 = vmatpush1.bf16.msra.mxu0 %v1716
    %2377 = vmatprep.subr.bf16.mxu0 0
    %2378 = vmatpush1.bf16.msra.mxu0 %v1717
    %2379 = vmatprep.subr.bf16.mxu0 0
    %2380 = vmatpush1.bf16.msra.mxu0 %v1718
    %2381 = vmatprep.subr.bf16.mxu0 0
    %2382 = vmatpush1.bf16.msra.mxu0 %v1719
    %2383 = vmatprep.subr.bf16.mxu0 0
    %2384 = vmatpush1.bf16.msra.mxu0 %v1720
    %2385 = vmatprep.mubr.bf16.mxu0 %v369
    %2386 = vmatmul.mubr.bf16.gmra.mrb[0].mxu0 %v368
    %v2387 = vpop.f32.mrb[0].mxu0
    %v2388 = vadd.f32 %v2348, %v2387
    %v2389 = vpop.f32.mrb[0].mxu0
    %v2390 = vpop.f32.mrb[0].mxu0
    %v2391 = vpop.f32.mrb[0].mxu0
    %2392 = vdwg.mxu0
    %vm2393 = vcmask 818176
    %2394 = vst.msk [vmem:[#allocation2] sm:$0xff] %vm2393, %v2388
    // Predicated region
    $region22: #{tpu_custom_call.1} parent=1 // pred_check
      _
    $region23: #{tpu_custom_call.1} parent=1 // pred_check_branch
      %2396 = sbr.rel (0) target = $region25
    $region24: #{tpu_custom_call.1} parent=1 // pred_region
      %s2398 = ssub.s32 128, 128
      %2399 = vsyncadd [#allocation3], %s2398
      %s2401 = sshll.u32 [#allocation2], 4
      %s2402 = int_to_ptr.vmem [resolvable:$true] %s2401
      %2404 = dma.vmem_to_hbm [thread:$0]  %s2402, 128, %s5, [#allocation3]
    $region25: #{tpu_custom_call.1} parent=1 // pred_fallthru
      _
    // Predicated region
    $region26: #{tpu_custom_call.1} parent=1 // pred_check
      _
    $region27: #{tpu_custom_call.1} parent=1 // pred_check_branch
      %2406 = sbr.rel (0) target = $region29
    $region28: #{tpu_custom_call.1} parent=1 // pred_region
      %2407 = dma.done [#allocation3], 128
    $region29: #{tpu_custom_call.1} parent=1 // pred_fallthru
      _
    %2408 = vsyncpa [#allocation3], 1

</llo_original>
